<compile_context>
chip_gen: v5e
topology: v5e:2x2
jax: 0.10.0
libtpu: 0.0.40
codegen_flags: <defaults>
</compile_context>

<pallas_src>
import functools

import jax
import jax.numpy as jnp
from jax.experimental import pallas as pl
from jax.experimental.pallas import tpu as pltpu


_CHUNK = 256                     # cumsum chunk == native MXU tile on v6e/v7x
_SIGN_BIT = 0x80000000           # force sign on -> ascending sort == descending err
_LSB_CLEAR = 0xFFFFFFFE          # clear mantissa LSB (label slot)
_ERR_MASK = 0x7FFFFFFE           # clear sign bit + label LSB -> recover |err|


def _round_up(x, m):
    return -(-x // m) * m


def _prep_kernel(logits_ref, target_ref, packed_ref, tot_ref, ce_ref, *, p_valid):
    # logits_ref: (C, T) f32 ; target_ref: (1, T) i32 (padded lanes hold -1).
    p = pl.program_id(0)
    logits = logits_ref[...]
    tgt = target_ref[...]
    C, T = logits.shape

    @pl.when(p == 0)
    def _():
        tot_ref[...] = jnp.zeros_like(tot_ref)
        ce_ref[...] = jnp.zeros_like(ce_ref)

    class_ids = jax.lax.broadcasted_iota(jnp.int32, (C, T), 0)
    onehot_b = class_ids == tgt                                    # (C, T) bool
    onehot = onehot_b.astype(jnp.float32)

    # Lovasz per-class errors on raw logits (matches the PyTorch module).  Pack the
    # onehot bit into the error's mantissa LSB (<= 1 ulp perturbation) and set the
    # sign bit so one plain ascending lax.sort yields descending-by-error order.
    err = jnp.abs(onehot - logits)
    err_bits = pltpu.bitcast(err, jnp.uint32)
    packed = ((err_bits & jnp.uint32(_LSB_CLEAR))
              | onehot_b.astype(jnp.uint32)
              | jnp.uint32(_SIGN_BIT))
    packed_ref[...] = pltpu.bitcast(packed, jnp.float32)

    tot_ref[...] += jnp.sum(onehot, axis=1, keepdims=True)         # per-class totals

    # Cross entropy: sum over valid lanes of [logsumexp_c - logit[target]].
    col = jax.lax.broadcasted_iota(jnp.int32, (1, T), 1) + p * T   # global position
    valid = (col < p_valid).astype(jnp.float32)                    # mask padded lanes
    m = jnp.max(logits, axis=0, keepdims=True)
    lse = m + jnp.log(jnp.sum(jnp.exp(logits - m), axis=0, keepdims=True))
    picked = jnp.sum(onehot * logits, axis=0, keepdims=True)
    ce_ref[...] += jnp.sum((lse - picked) * valid).reshape(1, 1)

    @pl.when(p == pl.num_programs(0) - 1)
    def _():
        ce_ref[...] = ce_ref[...] / p_valid                        # CE mean


def _lovasz_kernel(packed_ref, tot_ref, out_ref, cum_carry, loss_acc, tri_ref):
    # packed_ref (C, T) f32: per class, sorted descending by error; sign bit set,
    # onehot label packed in the mantissa LSB.
    p = pl.program_id(0)
    C, T = packed_ref.shape
    chunk = tri_ref.shape[0]
    n_chunks = T // chunk

    @pl.when(p == 0)
    def _():
        cum_carry[...] = jnp.zeros_like(cum_carry)
        loss_acc[...] = jnp.zeros_like(loss_acc)
        row = jax.lax.broadcasted_iota(jnp.int32, (chunk, chunk), 0)
        col = jax.lax.broadcasted_iota(jnp.int32, (chunk, chunk), 1)
        tri_ref[...] = (row <= col).astype(jnp.bfloat16)           # lower-tri cumsum

    total = tot_ref[...]                                           # (C, 1) label sums
    jbase = jax.lax.broadcasted_iota(jnp.int32, (C, chunk), 1) + p * T  # hoisted iota

    carry = cum_carry[...]                                         # running prefix
    part = jnp.zeros((C, 1), jnp.float32)
    # Static unroll over fixed 256-wide chunks; chunk prefix carried in registers.
    # TODO(synk): pltpu.matmul_push_rhs once at p==0 would keep the tri resident in
    # the MXU staging registers and cut the per-chunk weight push further.
    for c in range(n_chunks):
        off = c * chunk
        bits = pltpu.bitcast(packed_ref[:, off:off + chunk], jnp.uint32)
        labf = (bits & jnp.uint32(1)).astype(jnp.float32)          # onehot label 0/1
        errs = pltpu.bitcast(bits & jnp.uint32(_ERR_MASK), jnp.float32)

        # Chunk-local cumsum on the MXU (bf16 0/1 inputs, f32 accumulate -> exact)
        # plus the running prefix of all previous chunks / tiles.
        local = jnp.dot(labf.astype(jnp.bfloat16), tri_ref[...],
                        preferred_element_type=jnp.float32)
        cum = local + carry                                        # inclusive, global

        jpos = jbase + off                                         # global 0-based j
        j1 = (jpos + 1).astype(jnp.float32)
        i_cur = total - cum                                        # I[j]
        u_cur = total + j1 - cum                                   # U[j]   (>= 1)
        u_prev = u_cur - 1.0 + labf                                # U[j-1] (>= 1, j>0)
        is_first = jpos == 0
        # g[j] - g[j-1] = (I[j] + lab*j1) / (U[j-1]*U[j]);  g_diff[0] = 1 / U[0].
        num = jnp.where(is_first, 1.0, i_cur + labf * j1)
        den = jnp.where(is_first, u_cur, u_prev * u_cur)
        g_diff = num * pl.reciprocal(den, approx=False)

        part = part + jnp.sum(errs * g_diff, axis=1, keepdims=True)
        carry = cum[:, chunk - 1:chunk]

    cum_carry[...] = carry
    loss_acc[...] += part

    @pl.when(p == pl.num_programs(0) - 1)
    def _():
        out_ref[...] = (jnp.sum(loss_acc[...]) / C).reshape(1, 1)  # mean over classes


@functools.partial(jax.jit, static_argnames=("tile_p_prep", "tile_p_lovasz"))
def ce_iou_loss(logits, target, tile_p_prep=16384, tile_p_lovasz=2048):
    """logits: (N, C, D, H, W) float ; target: (N, D, H, W) int.

    tile_p_prep / tile_p_lovasz are the P-tile widths of the two kernels (clamped
    down for small inputs).  Large tiles amortize the ~0.35us per-grid-step cost;
    the lovasz cumsum is chunked at a fixed 256 internally so the tile width no
    longer carries a quadratic triangular-matmul cost.
    """
    N, C, D, H, W = logits.shape
    P = N * D * H * W

    # Clamp tiles for small problems; keep everything a multiple of the cumsum chunk.
    tile_l = _round_up(min(tile_p_lovasz, _round_up(P, _CHUNK)), _CHUNK)
    tile_p = _round_up(min(tile_p_prep, _round_up(P, tile_l)), tile_l)
    P_pad = _round_up(P, tile_p)

    # NCDHW -> (C, P): single transpose; same (n,d,h,w) flattening order as
    # input.permute(0,2,3,4,1).view(-1, C) in the PyTorch module.
    logits_cp = jnp.moveaxis(logits, 1, 0).reshape(C, P).astype(jnp.float32)
    target_flat = target.reshape(1, P).astype(jnp.int32)

    # Padded lanes: logits = 0, target = -1 -> onehot = 0, err = 0, packed = -0.0;
    # they sort after every real element and contribute exactly 0 to the lovasz dot;
    # CE masks them explicitly.
    if P_pad != P:
        logits_cp = jnp.pad(logits_cp, ((0, 0), (0, P_pad - P)))
        target_flat = jnp.pad(target_flat, ((0, 0), (0, P_pad - P)),
                              constant_values=-1)

    # TODO(synk): v7x megacore -- split this grid as (2, n_prep//2) with per-core
    # partial tot/ce accumulators summed in the wrapper; no-op on single-TC chips.
    n_prep = P_pad // tile_p
    packed, totals, ce = pl.pallas_call(
        functools.partial(_prep_kernel, p_valid=P),
        grid=(n_prep,),
        out_shape=(
            jax.ShapeDtypeStruct((C, P_pad), jnp.float32),   # packed err + label bit
            jax.ShapeDtypeStruct((C, 1), jnp.float32),       # per-class label totals
            jax.ShapeDtypeStruct((1, 1), jnp.float32),       # CE mean
        ),
        in_specs=[
            pl.BlockSpec((C, tile_p), lambda i: (0, i)),
            pl.BlockSpec((1, tile_p), lambda i: (0, i)),
        ],
        out_specs=(
            pl.BlockSpec((C, tile_p), lambda i: (0, i)),
            pl.BlockSpec((C, 1), lambda i: (0, 0)),
            pl.BlockSpec((1, 1), lambda i: (0, 0)),
        ),
        compiler_params=pltpu.CompilerParams(
            dimension_semantics=("arbitrary",),
            vmem_limit_bytes=48 * 1024 * 1024,
        ),
    )(logits_cp, target_flat)

    # TODO(synk): descending sort has no Pallas/TPU primitive -> one XLA sort along P.
    # Values are negative with the label in the mantissa LSB, so a single ascending
    # single-operand sort replaces the previous key/value (-err, label) sort.
    packed_sorted = jax.lax.sort(packed, dimension=1)

    # TODO(synk): the lovasz grid is serialized by the cumsum carry; a two-pass
    # tile-prefix scheme would allow a megacore split on v7x.
    n_lov = P_pad // tile_l
    lovasz = pl.pallas_call(
        _lovasz_kernel,
        grid=(n_lov,),
        out_shape=jax.ShapeDtypeStruct((1, 1), jnp.float32),
        in_specs=[
            pl.BlockSpec((C, tile_l), lambda i: (0, i)),
            pl.BlockSpec((C, 1), lambda i: (0, 0)),
        ],
        out_specs=pl.BlockSpec((1, 1), lambda i: (0, 0)),
        scratch_shapes=[
            pltpu.VMEM((C, 1), jnp.float32),              # running cumsum prefix
            pltpu.VMEM((C, 1), jnp.float32),              # per-class lovasz partials
            pltpu.VMEM((_CHUNK, _CHUNK), jnp.bfloat16),   # lower-tri cumsum matrix
        ],
        compiler_params=pltpu.CompilerParams(
            dimension_semantics=("arbitrary",),
            vmem_limit_bytes=48 * 1024 * 1024,
        ),
    )(packed_sorted, totals)

    return lovasz[0, 0] + ce[0, 0]


def _ref_loss(logits, target):
    """Pure-JAX reference mirroring the PyTorch module (for a sanity check)."""
    N, C, D, H, W = logits.shape
    lf = jnp.transpose(logits, (0, 2, 3, 4, 1)).reshape(-1, C)
    tf = target.reshape(-1)
    lse = jax.scipy.special.logsumexp(lf, axis=1)
    picked = jnp.take_along_axis(lf, tf[:, None], axis=1)[:, 0]
    ce = jnp.mean(lse - picked)
    losses = []
    for i in range(C):
        ct = (tf == i).astype(jnp.float32)
        err = jnp.abs(ct - lf[:, i])
        idx = jnp.argsort(-err)
        es = err[idx]
        ls = ct[idx]
        s = ls.sum()
        inter = s - jnp.cumsum(ls)
        uni = s + jnp.cumsum(1.0 - ls)
        g = 1.0 - inter / uni
        g = jnp.concatenate([g[:1], g[1:] - g[:-1]])
        losses.append(es @ g)
    return jnp.mean(jnp.stack(losses)) + ce


if __name__ == "__main__":
    key = jax.random.PRNGKey(0)
    k1, k2 = jax.random.split(key)
    N, C, D, H, W = 2, 4, 8, 8, 8
    logits = jax.random.normal(k1, (N, C, D, H, W), dtype=jnp.float32)
    target = jax.random.randint(k2, (N, D, H, W), 0, C, dtype=jnp.int32)

    ref = jax.block_until_ready(_ref_loss(logits, target))

    # Default (clamped) single-tile path.
    out = jax.block_until_ready(ce_iou_loss(logits, target))
    assert jnp.isfinite(out), out
    assert jnp.allclose(out, ref, rtol=1e-4, atol=1e-4), (out, ref)

    # Multi-tile path: exercises the cross-tile cumsum carry and the accumulators.
    out_mt = jax.block_until_ready(
        ce_iou_loss(logits, target, tile_p_prep=512, tile_p_lovasz=256))
    assert jnp.allclose(out_mt, ref, rtol=1e-4, atol=1e-4), (out_mt, ref)

    print("KERNEL_OK")
</pallas_src>

<mosaic_0001>
module attributes {stable_mosaic.version = 11 : i64} {
  func.func @_prep_kernel(%arg0: i32, %arg1: memref<4x1024xf32, #tpu.memory_space<vmem>>, %arg2: memref<1x1024xi32, #tpu.memory_space<vmem>>, %arg3: memref<4x1024xf32, #tpu.memory_space<vmem>>, %arg4: memref<4x1xf32, #tpu.memory_space<vmem>>, %arg5: memref<1x1xf32, #tpu.memory_space<vmem>>) attributes {dimension_semantics = [#tpu.dimension_semantics<arbitrary>], iteration_bounds = array<i64: 1>, scalar_prefetch = 0 : i64, scratch_operands = 0 : i64, tpu.core_type = #tpu.core_type<tc>, window_params = [{transform_indices = @transform_0, window_bounds = array<i64: 4, 1024>}, {transform_indices = @transform_1, window_bounds = array<i64: 1, 1024>}, {transform_indices = @transform_2, window_bounds = array<i64: 4, 1024>}, {pipeline_mode = #tpu.pipeline_mode<synchronous>, transform_indices = @transform_3, window_bounds = array<i64: 4, 1>}, {pipeline_mode = #tpu.pipeline_mode<synchronous>, transform_indices = @transform_4, window_bounds = array<i64: 1, 1>}]} {
    %c0 = arith.constant 0 : index
    %c0_0 = arith.constant 0 : index
    %0 = vector.load %arg1[%c0, %c0_0] : memref<4x1024xf32, #tpu.memory_space<vmem>>, vector<4x1024xf32>
    %c0_1 = arith.constant 0 : index
    %c0_2 = arith.constant 0 : index
    %1 = vector.load %arg2[%c0_1, %c0_2] : memref<1x1024xi32, #tpu.memory_space<vmem>>, vector<1x1024xi32>
    %c0_i32 = arith.constant 0 : i32
    %2 = arith.cmpi eq, %arg0, %c0_i32 : i32
    %3 = arith.extui %2 : i1 to i32
    %c0_i32_3 = arith.constant 0 : i32
    %4 = arith.cmpi ne, %3, %c0_i32_3 : i32
    scf.if %4 {
      %cst_21 = arith.constant 0.000000e+00 : f32
      %59 = vector.broadcast %cst_21 : f32 to vector<4x1xf32>
      %c0_22 = arith.constant 0 : index
      %c0_23 = arith.constant 0 : index
      %60 = vector.load %arg4[%c0_22, %c0_23] : memref<4x1xf32, #tpu.memory_space<vmem>>, vector<4x1xf32>
      tpu.vector_store %arg4[%c0_22, %c0_23], %59 {strides = array<i32>} : memref<4x1xf32, #tpu.memory_space<vmem>>, vector<4x1xf32>,
      %cst_24 = arith.constant 0.000000e+00 : f32
      %61 = vector.broadcast %cst_24 : f32 to vector<1x1xf32>
      %c0_25 = arith.constant 0 : index
      %c0_26 = arith.constant 0 : index
      %62 = vector.load %arg5[%c0_25, %c0_26] : memref<1x1xf32, #tpu.memory_space<vmem>>, vector<1x1xf32>
      tpu.vector_store %arg5[%c0_25, %c0_26], %61 {strides = array<i32>} : memref<1x1xf32, #tpu.memory_space<vmem>>, vector<1x1xf32>,
    } else {
    }
    %5 = tpu.iota {dimensions = array<i32: 0>} : vector<4x1024xi32>
    %6 = vector.broadcast %1 : vector<1x1024xi32> to vector<4x1024xi32>
    %7 = arith.cmpi eq, %5, %6 : vector<4x1024xi32>
    %8 = arith.extui %7 : vector<4x1024xi1> to vector<4x1024xi32>
    %9 = arith.sitofp %8 : vector<4x1024xi32> to vector<4x1024xf32>
    %10 = arith.subf %9, %0 : vector<4x1024xf32>
    %11 = math.absf %10 : vector<4x1024xf32>
    %12 = tpu.bitcast %11 : vector<4x1024xf32> -> vector<4x1024xi32>
    %c-2_i32 = arith.constant -2 : i32
    %13 = vector.broadcast %c-2_i32 : i32 to vector<4x1024xi32>
    %14 = arith.andi %12, %13 : vector<4x1024xi32>
    %15 = arith.extui %7 : vector<4x1024xi1> to vector<4x1024xi32>
    %16 = arith.ori %14, %15 : vector<4x1024xi32>
    %c-2147483648_i32 = arith.constant -2147483648 : i32
    %17 = vector.broadcast %c-2147483648_i32 : i32 to vector<4x1024xi32>
    %18 = arith.ori %16, %17 : vector<4x1024xi32>
    %19 = tpu.bitcast %18 : vector<4x1024xi32> -> vector<4x1024xf32>
    %c0_4 = arith.constant 0 : index
    %c0_5 = arith.constant 0 : index
    %20 = vector.load %arg3[%c0_4, %c0_5] : memref<4x1024xf32, #tpu.memory_space<vmem>>, vector<4x1024xf32>
    tpu.vector_store %arg3[%c0_4, %c0_5], %19 {strides = array<i32>} : memref<4x1024xf32, #tpu.memory_space<vmem>>, vector<4x1024xf32>,
    %c0_6 = arith.constant 0 : index
    %c0_7 = arith.constant 0 : index
    %21 = vector.load %arg4[%c0_6, %c0_7] : memref<4x1xf32, #tpu.memory_space<vmem>>, vector<4x1xf32>
    %cst = arith.constant dense<0.000000e+00> : vector<4xf32>
    %22 = vector.multi_reduction <add>, %9, %cst [1] : vector<4x1024xf32> to vector<4xf32>
    %23 = vector.shape_cast %22 : vector<4xf32> to vector<4x1xf32>
    %24 = arith.addf %21, %23 : vector<4x1xf32>
    %c0_8 = arith.constant 0 : index
    %c0_9 = arith.constant 0 : index
    %25 = vector.load %arg4[%c0_8, %c0_9] : memref<4x1xf32, #tpu.memory_space<vmem>>, vector<4x1xf32>
    tpu.vector_store %arg4[%c0_8, %c0_9], %24 {strides = array<i32>} : memref<4x1xf32, #tpu.memory_space<vmem>>, vector<4x1xf32>,
    %26 = tpu.iota {dimensions = array<i32: 1>} : vector<1x1024xi32>
    %c1024_i32 = arith.constant 1024 : i32
    %27 = arith.muli %arg0, %c1024_i32 : i32
    %28 = vector.broadcast %27 : i32 to vector<1x1024xi32>
    %29 = arith.addi %26, %28 : vector<1x1024xi32>
    %c1024_i32_10 = arith.constant 1024 : i32
    %30 = vector.broadcast %c1024_i32_10 : i32 to vector<1x1024xi32>
    %31 = arith.cmpi slt, %29, %30 : vector<1x1024xi32>
    %32 = arith.extui %31 : vector<1x1024xi1> to vector<1x1024xi32>
    %33 = arith.sitofp %32 : vector<1x1024xi32> to vector<1x1024xf32>
    %cst_11 = arith.constant dense<0xFF800000> : vector<1024xf32>
    %34 = vector.multi_reduction <maximumf>, %0, %cst_11 [0] : vector<4x1024xf32> to vector<1024xf32>
    %35 = vector.shape_cast %34 : vector<1024xf32> to vector<1x1024xf32>
    %36 = vector.broadcast %35 : vector<1x1024xf32> to vector<4x1024xf32>
    %37 = arith.subf %0, %36 : vector<4x1024xf32>
    %38 = math.exp %37 : vector<4x1024xf32>
    %cst_12 = arith.constant dense<0.000000e+00> : vector<1024xf32>
    %39 = vector.multi_reduction <add>, %38, %cst_12 [0] : vector<4x1024xf32> to vector<1024xf32>
    %40 = vector.shape_cast %39 : vector<1024xf32> to vector<1x1024xf32>
    %41 = math.log %40 : vector<1x1024xf32>
    %42 = arith.addf %35, %41 : vector<1x1024xf32>
    %43 = arith.mulf %9, %0 : vector<4x1024xf32>
    %cst_13 = arith.constant dense<0.000000e+00> : vector<1024xf32>
    %44 = vector.multi_reduction <add>, %43, %cst_13 [0] : vector<4x1024xf32> to vector<1024xf32>
    %45 = vector.shape_cast %44 : vector<1024xf32> to vector<1x1024xf32>
    %c0_14 = arith.constant 0 : index
    %c0_15 = arith.constant 0 : index
    %46 = vector.load %arg5[%c0_14, %c0_15] : memref<1x1xf32, #tpu.memory_space<vmem>>, vector<1x1xf32>
    %47 = arith.subf %42, %45 : vector<1x1024xf32>
    %48 = arith.mulf %47, %33 : vector<1x1024xf32>
    %49 = vector.shape_cast %48 : vector<1x1024xf32> to vector<1x1x1024xf32>
    %cst_16 = arith.constant dense<0.000000e+00> : vector<1xf32>
    %50 = vector.multi_reduction <add>, %49, %cst_16 [1, 2] : vector<1x1x1024xf32> to vector<1xf32>
    %51 = vector.shape_cast %50 : vector<1xf32> to vector<1x1x1xf32>
    %52 = vector.extract %51[0, 0, 0] : f32 from vector<1x1x1xf32>
    %53 = vector.broadcast %52 : f32 to vector<1x1xf32>
    %54 = arith.addf %46, %53 : vector<1x1xf32>
    %c0_17 = arith.constant 0 : index
    %c0_18 = arith.constant 0 : index
    %55 = vector.load %arg5[%c0_17, %c0_18] : memref<1x1xf32, #tpu.memory_space<vmem>>, vector<1x1xf32>
    tpu.vector_store %arg5[%c0_17, %c0_18], %54 {strides = array<i32>} : memref<1x1xf32, #tpu.memory_space<vmem>>, vector<1x1xf32>,
    %c0_i32_19 = arith.constant 0 : i32
    %56 = arith.cmpi eq, %arg0, %c0_i32_19 : i32
    %57 = arith.extui %56 : i1 to i32
    %c0_i32_20 = arith.constant 0 : i32
    %58 = arith.cmpi ne, %57, %c0_i32_20 : i32
    scf.if %58 {
      %c0_21 = arith.constant 0 : index
      %c0_22 = arith.constant 0 : index
      %59 = vector.load %arg5[%c0_21, %c0_22] : memref<1x1xf32, #tpu.memory_space<vmem>>, vector<1x1xf32>
      %cst_23 = arith.constant 1.024000e+03 : f32
      %60 = vector.broadcast %cst_23 : f32 to vector<1x1xf32>
      %61 = arith.divf %59, %60 : vector<1x1xf32>
      %c0_24 = arith.constant 0 : index
      %c0_25 = arith.constant 0 : index
      %62 = vector.load %arg5[%c0_24, %c0_25] : memref<1x1xf32, #tpu.memory_space<vmem>>, vector<1x1xf32>
      tpu.vector_store %arg5[%c0_24, %c0_25], %61 {strides = array<i32>} : memref<1x1xf32, #tpu.memory_space<vmem>>, vector<1x1xf32>,
    } else {
    }
    return
  }
  func.func @transform_0(%arg0: i32) -> (i32, i32) {
    %c0_i32 = arith.constant 0 : i32
    %c0_i32_0 = arith.constant 0 : i32
    return %c0_i32, %arg0 : i32, i32
  }
  func.func @transform_1(%arg0: i32) -> (i32, i32) {
    %c0_i32 = arith.constant 0 : i32
    %c0_i32_0 = arith.constant 0 : i32
    return %c0_i32, %arg0 : i32, i32
  }
  func.func @transform_2(%arg0: i32) -> (i32, i32) {
    %c0_i32 = arith.constant 0 : i32
    %c0_i32_0 = arith.constant 0 : i32
    return %c0_i32, %arg0 : i32, i32
  }
  func.func @transform_3(%arg0: i32) -> (i32, i32) {
    %c0_i32 = arith.constant 0 : i32
    %c0_i32_0 = arith.constant 0 : i32
    %c0_i32_1 = arith.constant 0 : i32
    return %c0_i32, %c0_i32_0 : i32, i32
  }
  func.func @transform_4(%arg0: i32) -> (i32, i32) {
    %c0_i32 = arith.constant 0 : i32
    %c0_i32_0 = arith.constant 0 : i32
    %c0_i32_1 = arith.constant 0 : i32
    return %c0_i32, %c0_i32_0 : i32, i32
  }
}

module attributes {stable_mosaic.version = 11 : i64} {
  func.func @_lovasz_kernel(%arg0: i32, %arg1: memref<4x1024xf32, #tpu.memory_space<vmem>>, %arg2: memref<4x1xf32, #tpu.memory_space<vmem>>, %arg3: memref<1x1xf32, #tpu.memory_space<vmem>>, %arg4: memref<4x1xf32, #tpu.memory_space<vmem>>, %arg5: memref<4x1xf32, #tpu.memory_space<vmem>>, %arg6: memref<256x256xbf16, #tpu.memory_space<vmem>>) attributes {dimension_semantics = [#tpu.dimension_semantics<arbitrary>], iteration_bounds = array<i64: 1>, scalar_prefetch = 0 : i64, scratch_operands = 3 : i64, tpu.core_type = #tpu.core_type<tc>, window_params = [{transform_indices = @transform_0, window_bounds = array<i64: 4, 1024>}, {pipeline_mode = #tpu.pipeline_mode<synchronous>, transform_indices = @transform_1, window_bounds = array<i64: 4, 1>}, {pipeline_mode = #tpu.pipeline_mode<synchronous>, transform_indices = @transform_2, window_bounds = array<i64: 1, 1>}]} {
    %c0_i32 = arith.constant 0 : i32
    %0 = arith.cmpi eq, %arg0, %c0_i32 : i32
    %1 = arith.extui %0 : i1 to i32
    %c0_i32_0 = arith.constant 0 : i32
    %2 = arith.cmpi ne, %1, %c0_i32_0 : i32
    scf.if %2 {
      %cst_56 = arith.constant 0.000000e+00 : f32
      %181 = vector.broadcast %cst_56 : f32 to vector<4x1xf32>
      %c0_57 = arith.constant 0 : index
      %c0_58 = arith.constant 0 : index
      %182 = vector.load %arg4[%c0_57, %c0_58] : memref<4x1xf32, #tpu.memory_space<vmem>>, vector<4x1xf32>
      tpu.vector_store %arg4[%c0_57, %c0_58], %181 {strides = array<i32>} : memref<4x1xf32, #tpu.memory_space<vmem>>, vector<4x1xf32>,
      %cst_59 = arith.constant 0.000000e+00 : f32
      %183 = vector.broadcast %cst_59 : f32 to vector<4x1xf32>
      %c0_60 = arith.constant 0 : index
      %c0_61 = arith.constant 0 : index
      %184 = vector.load %arg5[%c0_60, %c0_61] : memref<4x1xf32, #tpu.memory_space<vmem>>, vector<4x1xf32>
      tpu.vector_store %arg5[%c0_60, %c0_61], %183 {strides = array<i32>} : memref<4x1xf32, #tpu.memory_space<vmem>>, vector<4x1xf32>,
      %185 = tpu.iota {dimensions = array<i32: 0>} : vector<256x256xi32>
      %186 = tpu.iota {dimensions = array<i32: 1>} : vector<256x256xi32>
      %187 = arith.cmpi sle, %185, %186 : vector<256x256xi32>
      %188 = arith.extui %187 : vector<256x256xi1> to vector<256x256xi32>
      %189 = arith.sitofp %188 : vector<256x256xi32> to vector<256x256xf32>
      %190 = arith.truncf %189 : vector<256x256xf32> to vector<256x256xbf16>
      %c0_62 = arith.constant 0 : index
      %c0_63 = arith.constant 0 : index
      %191 = vector.load %arg6[%c0_62, %c0_63] : memref<256x256xbf16, #tpu.memory_space<vmem>>, vector<256x256xbf16>
      tpu.vector_store %arg6[%c0_62, %c0_63], %190 {strides = array<i32>} : memref<256x256xbf16, #tpu.memory_space<vmem>>, vector<256x256xbf16>,
    } else {
    }
    %c0 = arith.constant 0 : index
    %c0_1 = arith.constant 0 : index
    %3 = vector.load %arg2[%c0, %c0_1] : memref<4x1xf32, #tpu.memory_space<vmem>>, vector<4x1xf32>
    %4 = tpu.iota {dimensions = array<i32: 1>} : vector<4x256xi32>
    %c1024_i32 = arith.constant 1024 : i32
    %5 = arith.muli %arg0, %c1024_i32 : i32
    %6 = vector.broadcast %5 : i32 to vector<4x256xi32>
    %7 = arith.addi %4, %6 : vector<4x256xi32>
    %c0_2 = arith.constant 0 : index
    %c0_3 = arith.constant 0 : index
    %8 = vector.load %arg4[%c0_2, %c0_3] : memref<4x1xf32, #tpu.memory_space<vmem>>, vector<4x1xf32>
    %cst = arith.constant 0.000000e+00 : f32
    %9 = vector.broadcast %cst : f32 to vector<4x1xf32>
    %c0_4 = arith.constant 0 : index
    %c0_5 = arith.constant 0 : index
    %10 = vector.load %arg1[%c0_4, %c0_5] : memref<4x1024xf32, #tpu.memory_space<vmem>>, vector<4x256xf32>
    %11 = tpu.bitcast %10 : vector<4x256xf32> -> vector<4x256xi32>
    %c1_i32 = arith.constant 1 : i32
    %12 = vector.broadcast %c1_i32 : i32 to vector<4x256xi32>
    %13 = arith.andi %11, %12 : vector<4x256xi32>
    %14 = arith.uitofp %13 : vector<4x256xi32> to vector<4x256xf32>
    %c2147483646_i32 = arith.constant 2147483646 : i32
    %15 = vector.broadcast %c2147483646_i32 : i32 to vector<4x256xi32>
    %16 = arith.andi %11, %15 : vector<4x256xi32>
    %17 = tpu.bitcast %16 : vector<4x256xi32> -> vector<4x256xf32>
    %18 = arith.truncf %14 : vector<4x256xf32> to vector<4x256xbf16>
    %c0_6 = arith.constant 0 : index
    %c0_7 = arith.constant 0 : index
    %19 = vector.load %arg6[%c0_6, %c0_7] : memref<256x256xbf16, #tpu.memory_space<vmem>>, vector<256x256xbf16>
    %cst_8 = arith.constant dense<0.000000e+00> : vector<4x256xf32>
    %20 = tpu.matmul %18, %19, %cst_8 {dimension_numbers = #tpu.dot_dimension_numbers<[1], [0], [0], [1], [0, 0, 1, 1], [], []>} : vector<4x256xbf16>, vector<256x256xbf16>, vector<4x256xf32> -> vector<4x256xf32>
    %21 = vector.broadcast %8 : vector<4x1xf32> to vector<4x256xf32>
    %22 = arith.addf %20, %21 : vector<4x256xf32>
    %c0_i32_9 = arith.constant 0 : i32
    %23 = vector.broadcast %c0_i32_9 : i32 to vector<4x256xi32>
    %24 = arith.addi %7, %23 : vector<4x256xi32>
    %c1_i32_10 = arith.constant 1 : i32
    %25 = vector.broadcast %c1_i32_10 : i32 to vector<4x256xi32>
    %26 = arith.addi %24, %25 : vector<4x256xi32>
    %27 = arith.sitofp %26 : vector<4x256xi32> to vector<4x256xf32>
    %28 = vector.broadcast %3 : vector<4x1xf32> to vector<4x256xf32>
    %29 = arith.subf %28, %22 : vector<4x256xf32>
    %30 = vector.broadcast %3 : vector<4x1xf32> to vector<4x256xf32>
    %31 = arith.addf %30, %27 : vector<4x256xf32>
    %32 = arith.subf %31, %22 : vector<4x256xf32>
    %cst_11 = arith.constant 1.000000e+00 : f32
    %33 = vector.broadcast %cst_11 : f32 to vector<4x256xf32>
    %34 = arith.subf %32, %33 : vector<4x256xf32>
    %35 = arith.addf %34, %14 : vector<4x256xf32>
    %c0_i32_12 = arith.constant 0 : i32
    %36 = vector.broadcast %c0_i32_12 : i32 to vector<4x256xi32>
    %37 = arith.cmpi eq, %24, %36 : vector<4x256xi32>
    %38 = arith.mulf %14, %27 : vector<4x256xf32>
    %39 = arith.addf %29, %38 : vector<4x256xf32>
    %cst_13 = arith.constant 1.000000e+00 : f32
    %40 = vector.broadcast %cst_13 : f32 to vector<4x256xf32>
    %41 = arith.select %37, %40, %39 : vector<4x256xi1>, vector<4x256xf32>
    %42 = arith.mulf %35, %32 : vector<4x256xf32>
    %43 = arith.select %37, %32, %42 : vector<4x256xi1>, vector<4x256xf32>
    %44 = tpu.reciprocal %43 : vector<4x256xf32> -> vector<4x256xf32>
    %45 = arith.mulf %41, %44 : vector<4x256xf32>
    %46 = arith.mulf %17, %45 : vector<4x256xf32>
    %cst_14 = arith.constant dense<0.000000e+00> : vector<4xf32>
    %47 = vector.multi_reduction <add>, %46, %cst_14 [1] : vector<4x256xf32> to vector<4xf32>
    %48 = vector.shape_cast %47 : vector<4xf32> to vector<4x1xf32>
    %49 = arith.addf %9, %48 : vector<4x1xf32>
    %50 = vector.extract_strided_slice %22 {offsets = [0, 255], sizes = [4, 1], strides = [1, 1]} : vector<4x256xf32> to vector<4x1xf32>
    %c0_15 = arith.constant 0 : index
    %c256 = arith.constant 256 : index
    %51 = vector.load %arg1[%c0_15, %c256] : memref<4x1024xf32, #tpu.memory_space<vmem>>, vector<4x256xf32>
    %52 = tpu.bitcast %51 : vector<4x256xf32> -> vector<4x256xi32>
    %c1_i32_16 = arith.constant 1 : i32
    %53 = vector.broadcast %c1_i32_16 : i32 to vector<4x256xi32>
    %54 = arith.andi %52, %53 : vector<4x256xi32>
    %55 = arith.uitofp %54 : vector<4x256xi32> to vector<4x256xf32>
    %c2147483646_i32_17 = arith.constant 2147483646 : i32
    %56 = vector.broadcast %c2147483646_i32_17 : i32 to vector<4x256xi32>
    %57 = arith.andi %52, %56 : vector<4x256xi32>
    %58 = tpu.bitcast %57 : vector<4x256xi32> -> vector<4x256xf32>
    %59 = arith.truncf %55 : vector<4x256xf32> to vector<4x256xbf16>
    %c0_18 = arith.constant 0 : index
    %c0_19 = arith.constant 0 : index
    %60 = vector.load %arg6[%c0_18, %c0_19] : memref<256x256xbf16, #tpu.memory_space<vmem>>, vector<256x256xbf16>
    %cst_20 = arith.constant dense<0.000000e+00> : vector<4x256xf32>
    %61 = tpu.matmul %59, %60, %cst_20 {dimension_numbers = #tpu.dot_dimension_numbers<[1], [0], [0], [1], [0, 0, 1, 1], [], []>} : vector<4x256xbf16>, vector<256x256xbf16>, vector<4x256xf32> -> vector<4x256xf32>
    %62 = vector.broadcast %50 : vector<4x1xf32> to vector<4x256xf32>
    %63 = arith.addf %61, %62 : vector<4x256xf32>
    %c256_i32 = arith.constant 256 : i32
    %64 = vector.broadcast %c256_i32 : i32 to vector<4x256xi32>
    %65 = arith.addi %7, %64 : vector<4x256xi32>
    %c1_i32_21 = arith.constant 1 : i32
    %66 = vector.broadcast %c1_i32_21 : i32 to vector<4x256xi32>
    %67 = arith.addi %65, %66 : vector<4x256xi32>
    %68 = arith.sitofp %67 : vector<4x256xi32> to vector<4x256xf32>
    %69 = vector.broadcast %3 : vector<4x1xf32> to vector<4x256xf32>
    %70 = arith.subf %69, %63 : vector<4x256xf32>
    %71 = vector.broadcast %3 : vector<4x1xf32> to vector<4x256xf32>
    %72 = arith.addf %71, %68 : vector<4x256xf32>
    %73 = arith.subf %72, %63 : vector<4x256xf32>
    %cst_22 = arith.constant 1.000000e+00 : f32
    %74 = vector.broadcast %cst_22 : f32 to vector<4x256xf32>
    %75 = arith.subf %73, %74 : vector<4x256xf32>
    %76 = arith.addf %75, %55 : vector<4x256xf32>
    %c0_i32_23 = arith.constant 0 : i32
    %77 = vector.broadcast %c0_i32_23 : i32 to vector<4x256xi32>
    %78 = arith.cmpi eq, %65, %77 : vector<4x256xi32>
    %79 = arith.mulf %55, %68 : vector<4x256xf32>
    %80 = arith.addf %70, %79 : vector<4x256xf32>
    %cst_24 = arith.constant 1.000000e+00 : f32
    %81 = vector.broadcast %cst_24 : f32 to vector<4x256xf32>
    %82 = arith.select %78, %81, %80 : vector<4x256xi1>, vector<4x256xf32>
    %83 = arith.mulf %76, %73 : vector<4x256xf32>
    %84 = arith.select %78, %73, %83 : vector<4x256xi1>, vector<4x256xf32>
    %85 = tpu.reciprocal %84 : vector<4x256xf32> -> vector<4x256xf32>
    %86 = arith.mulf %82, %85 : vector<4x256xf32>
    %87 = arith.mulf %58, %86 : vector<4x256xf32>
    %cst_25 = arith.constant dense<0.000000e+00> : vector<4xf32>
    %88 = vector.multi_reduction <add>, %87, %cst_25 [1] : vector<4x256xf32> to vector<4xf32>
    %89 = vector.shape_cast %88 : vector<4xf32> to vector<4x1xf32>
    %90 = arith.addf %49, %89 : vector<4x1xf32>
    %91 = vector.extract_strided_slice %63 {offsets = [0, 255], sizes = [4, 1], strides = [1, 1]} : vector<4x256xf32> to vector<4x1xf32>
    %c0_26 = arith.constant 0 : index
    %c512 = arith.constant 512 : index
    %92 = vector.load %arg1[%c0_26, %c512] : memref<4x1024xf32, #tpu.memory_space<vmem>>, vector<4x256xf32>
    %93 = tpu.bitcast %92 : vector<4x256xf32> -> vector<4x256xi32>
    %c1_i32_27 = arith.constant 1 : i32
    %94 = vector.broadcast %c1_i32_27 : i32 to vector<4x256xi32>
    %95 = arith.andi %93, %94 : vector<4x256xi32>
    %96 = arith.uitofp %95 : vector<4x256xi32> to vector<4x256xf32>
    %c2147483646_i32_28 = arith.constant 2147483646 : i32
    %97 = vector.broadcast %c2147483646_i32_28 : i32 to vector<4x256xi32>
    %98 = arith.andi %93, %97 : vector<4x256xi32>
    %99 = tpu.bitcast %98 : vector<4x256xi32> -> vector<4x256xf32>
    %100 = arith.truncf %96 : vector<4x256xf32> to vector<4x256xbf16>
    %c0_29 = arith.constant 0 : index
    %c0_30 = arith.constant 0 : index
    %101 = vector.load %arg6[%c0_29, %c0_30] : memref<256x256xbf16, #tpu.memory_space<vmem>>, vector<256x256xbf16>
    %cst_31 = arith.constant dense<0.000000e+00> : vector<4x256xf32>
    %102 = tpu.matmul %100, %101, %cst_31 {dimension_numbers = #tpu.dot_dimension_numbers<[1], [0], [0], [1], [0, 0, 1, 1], [], []>} : vector<4x256xbf16>, vector<256x256xbf16>, vector<4x256xf32> -> vector<4x256xf32>
    %103 = vector.broadcast %91 : vector<4x1xf32> to vector<4x256xf32>
    %104 = arith.addf %102, %103 : vector<4x256xf32>
    %c512_i32 = arith.constant 512 : i32
    %105 = vector.broadcast %c512_i32 : i32 to vector<4x256xi32>
    %106 = arith.addi %7, %105 : vector<4x256xi32>
    %c1_i32_32 = arith.constant 1 : i32
    %107 = vector.broadcast %c1_i32_32 : i32 to vector<4x256xi32>
    %108 = arith.addi %106, %107 : vector<4x256xi32>
    %109 = arith.sitofp %108 : vector<4x256xi32> to vector<4x256xf32>
    %110 = vector.broadcast %3 : vector<4x1xf32> to vector<4x256xf32>
    %111 = arith.subf %110, %104 : vector<4x256xf32>
    %112 = vector.broadcast %3 : vector<4x1xf32> to vector<4x256xf32>
    %113 = arith.addf %112, %109 : vector<4x256xf32>
    %114 = arith.subf %113, %104 : vector<4x256xf32>
    %cst_33 = arith.constant 1.000000e+00 : f32
    %115 = vector.broadcast %cst_33 : f32 to vector<4x256xf32>
    %116 = arith.subf %114, %115 : vector<4x256xf32>
    %117 = arith.addf %116, %96 : vector<4x256xf32>
    %c0_i32_34 = arith.constant 0 : i32
    %118 = vector.broadcast %c0_i32_34 : i32 to vector<4x256xi32>
    %119 = arith.cmpi eq, %106, %118 : vector<4x256xi32>
    %120 = arith.mulf %96, %109 : vector<4x256xf32>
    %121 = arith.addf %111, %120 : vector<4x256xf32>
    %cst_35 = arith.constant 1.000000e+00 : f32
    %122 = vector.broadcast %cst_35 : f32 to vector<4x256xf32>
    %123 = arith.select %119, %122, %121 : vector<4x256xi1>, vector<4x256xf32>
    %124 = arith.mulf %117, %114 : vector<4x256xf32>
    %125 = arith.select %119, %114, %124 : vector<4x256xi1>, vector<4x256xf32>
    %126 = tpu.reciprocal %125 : vector<4x256xf32> -> vector<4x256xf32>
    %127 = arith.mulf %123, %126 : vector<4x256xf32>
    %128 = arith.mulf %99, %127 : vector<4x256xf32>
    %cst_36 = arith.constant dense<0.000000e+00> : vector<4xf32>
    %129 = vector.multi_reduction <add>, %128, %cst_36 [1] : vector<4x256xf32> to vector<4xf32>
    %130 = vector.shape_cast %129 : vector<4xf32> to vector<4x1xf32>
    %131 = arith.addf %90, %130 : vector<4x1xf32>
    %132 = vector.extract_strided_slice %104 {offsets = [0, 255], sizes = [4, 1], strides = [1, 1]} : vector<4x256xf32> to vector<4x1xf32>
    %c0_37 = arith.constant 0 : index
    %c768 = arith.constant 768 : index
    %133 = vector.load %arg1[%c0_37, %c768] : memref<4x1024xf32, #tpu.memory_space<vmem>>, vector<4x256xf32>
    %134 = tpu.bitcast %133 : vector<4x256xf32> -> vector<4x256xi32>
    %c1_i32_38 = arith.constant 1 : i32
    %135 = vector.broadcast %c1_i32_38 : i32 to vector<4x256xi32>
    %136 = arith.andi %134, %135 : vector<4x256xi32>
    %137 = arith.uitofp %136 : vector<4x256xi32> to vector<4x256xf32>
    %c2147483646_i32_39 = arith.constant 2147483646 : i32
    %138 = vector.broadcast %c2147483646_i32_39 : i32 to vector<4x256xi32>
    %139 = arith.andi %134, %138 : vector<4x256xi32>
    %140 = tpu.bitcast %139 : vector<4x256xi32> -> vector<4x256xf32>
    %141 = arith.truncf %137 : vector<4x256xf32> to vector<4x256xbf16>
    %c0_40 = arith.constant 0 : index
    %c0_41 = arith.constant 0 : index
    %142 = vector.load %arg6[%c0_40, %c0_41] : memref<256x256xbf16, #tpu.memory_space<vmem>>, vector<256x256xbf16>
    %cst_42 = arith.constant dense<0.000000e+00> : vector<4x256xf32>
    %143 = tpu.matmul %141, %142, %cst_42 {dimension_numbers = #tpu.dot_dimension_numbers<[1], [0], [0], [1], [0, 0, 1, 1], [], []>} : vector<4x256xbf16>, vector<256x256xbf16>, vector<4x256xf32> -> vector<4x256xf32>
    %144 = vector.broadcast %132 : vector<4x1xf32> to vector<4x256xf32>
    %145 = arith.addf %143, %144 : vector<4x256xf32>
    %c768_i32 = arith.constant 768 : i32
    %146 = vector.broadcast %c768_i32 : i32 to vector<4x256xi32>
    %147 = arith.addi %7, %146 : vector<4x256xi32>
    %c1_i32_43 = arith.constant 1 : i32
    %148 = vector.broadcast %c1_i32_43 : i32 to vector<4x256xi32>
    %149 = arith.addi %147, %148 : vector<4x256xi32>
    %150 = arith.sitofp %149 : vector<4x256xi32> to vector<4x256xf32>
    %151 = vector.broadcast %3 : vector<4x1xf32> to vector<4x256xf32>
    %152 = arith.subf %151, %145 : vector<4x256xf32>
    %153 = vector.broadcast %3 : vector<4x1xf32> to vector<4x256xf32>
    %154 = arith.addf %153, %150 : vector<4x256xf32>
    %155 = arith.subf %154, %145 : vector<4x256xf32>
    %cst_44 = arith.constant 1.000000e+00 : f32
    %156 = vector.broadcast %cst_44 : f32 to vector<4x256xf32>
    %157 = arith.subf %155, %156 : vector<4x256xf32>
    %158 = arith.addf %157, %137 : vector<4x256xf32>
    %c0_i32_45 = arith.constant 0 : i32
    %159 = vector.broadcast %c0_i32_45 : i32 to vector<4x256xi32>
    %160 = arith.cmpi eq, %147, %159 : vector<4x256xi32>
    %161 = arith.mulf %137, %150 : vector<4x256xf32>
    %162 = arith.addf %152, %161 : vector<4x256xf32>
    %cst_46 = arith.constant 1.000000e+00 : f32
    %163 = vector.broadcast %cst_46 : f32 to vector<4x256xf32>
    %164 = arith.select %160, %163, %162 : vector<4x256xi1>, vector<4x256xf32>
    %165 = arith.mulf %158, %155 : vector<4x256xf32>
    %166 = arith.select %160, %155, %165 : vector<4x256xi1>, vector<4x256xf32>
    %167 = tpu.reciprocal %166 : vector<4x256xf32> -> vector<4x256xf32>
    %168 = arith.mulf %164, %167 : vector<4x256xf32>
    %169 = arith.mulf %140, %168 : vector<4x256xf32>
    %cst_47 = arith.constant dense<0.000000e+00> : vector<4xf32>
    %170 = vector.multi_reduction <add>, %169, %cst_47 [1] : vector<4x256xf32> to vector<4xf32>
    %171 = vector.shape_cast %170 : vector<4xf32> to vector<4x1xf32>
    %172 = arith.addf %131, %171 : vector<4x1xf32>
    %173 = vector.extract_strided_slice %145 {offsets = [0, 255], sizes = [4, 1], strides = [1, 1]} : vector<4x256xf32> to vector<4x1xf32>
    %c0_48 = arith.constant 0 : index
    %c0_49 = arith.constant 0 : index
    %174 = vector.load %arg4[%c0_48, %c0_49] : memref<4x1xf32, #tpu.memory_space<vmem>>, vector<4x1xf32>
    tpu.vector_store %arg4[%c0_48, %c0_49], %173 {strides = array<i32>} : memref<4x1xf32, #tpu.memory_space<vmem>>, vector<4x1xf32>,
    %c0_50 = arith.constant 0 : index
    %c0_51 = arith.constant 0 : index
    %175 = vector.load %arg5[%c0_50, %c0_51] : memref<4x1xf32, #tpu.memory_space<vmem>>, vector<4x1xf32>
    %176 = arith.addf %175, %172 : vector<4x1xf32>
    %c0_52 = arith.constant 0 : index
    %c0_53 = arith.constant 0 : index
    %177 = vector.load %arg5[%c0_52, %c0_53] : memref<4x1xf32, #tpu.memory_space<vmem>>, vector<4x1xf32>
    tpu.vector_store %arg5[%c0_52, %c0_53], %176 {strides = array<i32>} : memref<4x1xf32, #tpu.memory_space<vmem>>, vector<4x1xf32>,
    %c0_i32_54 = arith.constant 0 : i32
    %178 = arith.cmpi eq, %arg0, %c0_i32_54 : i32
    %179 = arith.extui %178 : i1 to i32
    %c0_i32_55 = arith.constant 0 : i32
    %180 = arith.cmpi ne, %179, %c0_i32_55 : i32
    scf.if %180 {
      %c0_56 = arith.constant 0 : index
      %c0_57 = arith.constant 0 : index
      %181 = vector.load %arg5[%c0_56, %c0_57] : memref<4x1xf32, #tpu.memory_space<vmem>>, vector<4x1xf32>
      %182 = vector.shape_cast %181 : vector<4x1xf32> to vector<1x4x1xf32>
      %cst_58 = arith.constant dense<0.000000e+00> : vector<1xf32>
      %183 = vector.multi_reduction <add>, %182, %cst_58 [1, 2] : vector<1x4x1xf32> to vector<1xf32>
      %184 = vector.shape_cast %183 : vector<1xf32> to vector<1x1x1xf32>
      %185 = vector.extract %184[0, 0, 0] : f32 from vector<1x1x1xf32>
      %cst_59 = arith.constant 4.000000e+00 : f32
      %186 = arith.divf %185, %cst_59 : f32
      %187 = vector.broadcast %186 : f32 to vector<1x1xf32>
      %c0_60 = arith.constant 0 : index
      %c0_61 = arith.constant 0 : index
      %188 = vector.load %arg3[%c0_60, %c0_61] : memref<1x1xf32, #tpu.memory_space<vmem>>, vector<1x1xf32>
      tpu.vector_store %arg3[%c0_60, %c0_61], %187 {strides = array<i32>} : memref<1x1xf32, #tpu.memory_space<vmem>>, vector<1x1xf32>,
    } else {
    }
    return
  }
  func.func @transform_0(%arg0: i32) -> (i32, i32) {
    %c0_i32 = arith.constant 0 : i32
    %c0_i32_0 = arith.constant 0 : i32
    return %c0_i32, %arg0 : i32, i32
  }
  func.func @transform_1(%arg0: i32) -> (i32, i32) {
    %c0_i32 = arith.constant 0 : i32
    %c0_i32_0 = arith.constant 0 : i32
    %c0_i32_1 = arith.constant 0 : i32
    return %c0_i32, %c0_i32_0 : i32, i32
  }
  func.func @transform_2(%arg0: i32) -> (i32, i32) {
    %c0_i32 = arith.constant 0 : i32
    %c0_i32_0 = arith.constant 0 : i32
    %c0_i32_1 = arith.constant 0 : i32
    return %c0_i32, %c0_i32_0 : i32, i32
  }
}

</mosaic_0001>

<llo_original>
// kernel: ce_iou_loss.2
$region0: #{ce_iou_loss.2}
  #allocation0 [shape = 'u32[]', space=smem, size = 0x4, offset = 0x4, fixed_abs, tag = 'smem constant byte address 0x4 - core index']
  #allocation1 [shape = 'u32[72,128]{1,0:T(1,128)}', space=vmem, size = 0x9000, scoped, tag = 'internal scratch']
  %s0 = inlined_call_operand.vmem [shape: f32[4,1024], index: 0, kind: input, shape index: {}]
  %s1 = inlined_call_operand.vmem [shape: s32[1,1024], index: 1, kind: input, shape index: {}]
  %s2 = inlined_call_operand.vmem [shape: f32[4,1024], index: 2, kind: output, shape index: {0}]
  %s3 = inlined_call_operand.vmem [shape: f32[4,1], index: 3, kind: output, shape index: {1}]
  %s4 = inlined_call_operand.hbm [shape: f32[1,1], index: 4, kind: output, shape index: {2}]
  %5 = xla_tuple %s2, %s3, %s4
  %s6 = sld [smem:[#allocation0]]
  $region42: #{ce_iou_loss.2} parent=0
    _
  %s8 = ssub.s32 1, %s6
  %s9 = scalar_select 0, %s8, %s6
  $region1: #{ce_iou_loss.2} parent=0
    #allocation2 [shape = 'u8[512]{0}', space=vmem, size = 0x400, scoped, tag = 'output window, operand 2, single buffered']
    #allocation3 [shape = 's32[1]{0}', space=sflag, size = 0x4, scoped, tag = 'scoped memory for ce_iou_loss.2']
    %10 = vsyncpa [#allocation3], 0
    // Predicated region
    $region2: #{ce_iou_loss.2} parent=1 // pred_check
      _
    $region3: #{ce_iou_loss.2} parent=1 // pred_check_branch
      %12 = sbr.rel (0) target = $region5
    $region4: #{ce_iou_loss.2} parent=1 // pred_region
      _
    $region5: #{ce_iou_loss.2} parent=1 // pred_fallthru
      _
    // Predicated region
    $region6: #{ce_iou_loss.2} parent=1 // pred_check
      _
    $region7: #{ce_iou_loss.2} parent=1 // pred_check_branch
      %14 = sbr.rel (0) target = $region9
    $region8: #{ce_iou_loss.2} parent=1 // pred_region
      _
    $region9: #{ce_iou_loss.2} parent=1 // pred_fallthru
      _
    %v15 = vld [vmem:[%s0] sm:$0xff]
    %v16 = vld [vmem:[%s0 + $0x8] sm:$0xff]
    %v17 = vld [vmem:[%s0 + $0x10] sm:$0xff]
    %v18 = vld [vmem:[%s0 + $0x18] sm:$0xff]
    %v19 = vld [vmem:[%s1] sm:$0xff]
    %p20 = scmp.eq.s32.totalorder 0, 0
    // Predicated region
    $region10: #{ce_iou_loss.2} parent=1 // pred_check
      %p21 = pneg %p20
    $region11: #{ce_iou_loss.2} parent=1 // pred_check_branch
      %23 = sbr.rel (%p21) target = $region13
    $region12: #{ce_iou_loss.2} parent=1 // pred_region
      %vm24 = vcmask 3072
      %25 = vst.msk [vmem:[%s3] sm:$0xf] %vm24, 0.0
      %vm26 = vcmask 0
      %27 = vst.msk [vmem:[#allocation2] sm:$0x1] %vm26, 0.0
    $region13: #{ce_iou_loss.2} parent=1 // pred_fallthru
      _
    %v28 = vlaneseq
    %v29 = vshrl.u32 %v28, 7
    %v30 = vperm.slane %v19, 0
    %v31 = vperm.slane %v19, 1
    %v32 = vperm.slane %v19, 2
    %v33 = vperm.slane %v19, 3
    %v34 = vperm.slane %v19, 4
    %v35 = vperm.slane %v19, 5
    %v36 = vperm.slane %v19, 6
    %v37 = vperm.slane %v19, 7
    %vm38 = vcmp.eq.s32.totalorder %v29, %v30
    %vm39 = vcmp.eq.s32.totalorder %v29, %v31
    %vm40 = vcmp.eq.s32.totalorder %v29, %v32
    %vm41 = vcmp.eq.s32.totalorder %v29, %v33
    %vm42 = vcmp.eq.s32.totalorder %v29, %v34
    %vm43 = vcmp.eq.s32.totalorder %v29, %v35
    %vm44 = vcmp.eq.s32.totalorder %v29, %v36
    %vm45 = vcmp.eq.s32.totalorder %v29, %v37
    %v46 = vsel %vm38, 1, 0
    %v47 = vsel %vm39, 1, 0
    %v48 = vsel %vm40, 1, 0
    %v49 = vsel %vm41, 1, 0
    %v50 = vsel %vm42, 1, 0
    %v51 = vsel %vm43, 1, 0
    %v52 = vsel %vm44, 1, 0
    %v53 = vsel %vm45, 1, 0
    %v54 = vcvt.s32.f32 %v46
    %v55 = vcvt.s32.f32 %v47
    %v56 = vcvt.s32.f32 %v48
    %v57 = vcvt.s32.f32 %v49
    %v58 = vcvt.s32.f32 %v50
    %v59 = vcvt.s32.f32 %v51
    %v60 = vcvt.s32.f32 %v52
    %v61 = vcvt.s32.f32 %v53
    %66 = vst [vmem:[#allocation1] ss:$2 sm:$0xff] %v15
    %s67 = scalar_lea.vmem [#allocation1], 16
    %68 = vst [vmem:[%s67] ss:$2 sm:$0xff] %v16
    %s69 = scalar_lea.vmem [#allocation1], 32
    %70 = vst [vmem:[%s69] ss:$2 sm:$0xff] %v17
    %s71 = scalar_lea.vmem [#allocation1], 48
    %72 = vst [vmem:[%s71] ss:$2 sm:$0xff] %v18
    %v73 = vld.sshfl [vmem:[#allocation1] sm:$0xff pattern:$0x75316420]
    %v74 = vld.sshfl [vmem:[#allocation1 + $0x8] sm:$0xff pattern:$0x75316420]
    %v75 = vld.sshfl [vmem:[#allocation1 + $0x10] sm:$0xff pattern:$0x75316420]
    %v76 = vld.sshfl [vmem:[#allocation1 + $0x18] sm:$0xff pattern:$0x75316420]
    %v77 = vld.sshfl [vmem:[#allocation1 + $0x20] sm:$0xff pattern:$0x75316420]
    %v78 = vld.sshfl [vmem:[#allocation1 + $0x28] sm:$0xff pattern:$0x75316420]
    %v79 = vld.sshfl [vmem:[#allocation1 + $0x30] sm:$0xff pattern:$0x75316420]
    %v80 = vld.sshfl [vmem:[#allocation1 + $0x38] sm:$0xff pattern:$0x75316420]
    %v89 = vsub.f32 %v54, %v73
    %v90 = vsub.f32 %v55, %v74
    %v91 = vsub.f32 %v56, %v75
    %v92 = vsub.f32 %v57, %v76
    %v93 = vsub.f32 %v58, %v77
    %v94 = vsub.f32 %v59, %v78
    %v95 = vsub.f32 %v60, %v79
    %v96 = vsub.f32 %v61, %v80
    %v97 = vand.u32 2147483647, %v89
    %v98 = vand.u32 2147483647, %v90
    %v99 = vand.u32 2147483647, %v91
    %v100 = vand.u32 2147483647, %v92
    %v101 = vand.u32 2147483647, %v93
    %v102 = vand.u32 2147483647, %v94
    %v103 = vand.u32 2147483647, %v95
    %v104 = vand.u32 2147483647, %v96
    %v113 = vand.u32 %v97, 4294967294
    %v114 = vand.u32 %v98, 4294967294
    %v115 = vand.u32 %v99, 4294967294
    %v116 = vand.u32 %v100, 4294967294
    %v117 = vand.u32 %v101, 4294967294
    %v118 = vand.u32 %v102, 4294967294
    %v119 = vand.u32 %v103, 4294967294
    %v120 = vand.u32 %v104, 4294967294
    %v121 = vor.u32 %v113, %v46
    %v122 = vor.u32 %v114, %v47
    %v123 = vor.u32 %v115, %v48
    %v124 = vor.u32 %v116, %v49
    %v125 = vor.u32 %v117, %v50
    %v126 = vor.u32 %v118, %v51
    %v127 = vor.u32 %v119, %v52
    %v128 = vor.u32 %v120, %v53
    %v129 = vor.u32 %v121, 2147483648
    %v130 = vor.u32 %v122, 2147483648
    %v131 = vor.u32 %v123, 2147483648
    %v132 = vor.u32 %v124, 2147483648
    %v133 = vor.u32 %v125, 2147483648
    %v134 = vor.u32 %v126, 2147483648
    %v135 = vor.u32 %v127, 2147483648
    %v136 = vor.u32 %v128, 2147483648
    %v137 = vrot.slane %v130, 4
    %v138 = vrot.slane %v132, 4
    %v139 = vrot.slane %v134, 4
    %v140 = vrot.slane %v136, 4
    %vm141 = vcmask 1043456
    %v142 = vsel %vm141, %v129, %v137
    %v143 = vsel %vm141, %v131, %v138
    %v144 = vsel %vm141, %v133, %v139
    %v145 = vsel %vm141, %v135, %v140
    %150 = vst [vmem:[%s2] sm:$0xff] %v142
    %151 = vst [vmem:[%s2 + $0x8] sm:$0xff] %v143
    %152 = vst [vmem:[%s2 + $0x10] sm:$0xff] %v144
    %153 = vst [vmem:[%s2 + $0x18] sm:$0xff] %v145
    %v154 = vld [vmem:[%s3] sm:$0xf]
    %v155 = vsel %vm141, %v54, 0.0
    %v156 = vsel %vm141, %v55, 0.0
    %v157 = vadd.f32 %v155, %v156
    %v158 = vsel %vm141, %v56, 0.0
    %v159 = vadd.f32 %v157, %v158
    %v160 = vsel %vm141, %v57, 0.0
    %v161 = vadd.f32 %v159, %v160
    %v162 = vsel %vm141, %v58, 0.0
    %v163 = vadd.f32 %v161, %v162
    %v164 = vsel %vm141, %v59, 0.0
    %v165 = vadd.f32 %v163, %v164
    %v166 = vsel %vm141, %v60, 0.0
    %v167 = vadd.f32 %v165, %v166
    %v168 = vsel %vm141, %v61, 0.0
    %v169 = vadd.f32 %v167, %v168
    %170 = vadd.xlane.f32.xlu0 %v169
    %v171 = vpop.xlane.xlu0 %170
    %v172 = vadd.f32 %v154, %v171
    %vm173 = vcmask 3072
    %174 = vst.msk [vmem:[%s3] sm:$0xf] %vm173, %v172
    %v175 = vlaneseq
    %v176 = vand.u32 %v175, 127
    %v177 = vadd.s32 %v176, 128
    %v178 = vadd.s32 %v176, 256
    %v179 = vadd.s32 %v176, 384
    %v180 = vadd.s32 %v176, 512
    %v181 = vadd.s32 %v176, 640
    %v182 = vadd.s32 %v176, 768
    %v183 = vadd.s32 %v176, 896
    %s184 = smul.u32 0, 1024
    %v185 = vstv %s184
    %v186 = vadd.s32 %v176, %v185
    %v187 = vadd.s32 %v177, %v185
    %v188 = vadd.s32 %v178, %v185
    %v189 = vadd.s32 %v179, %v185
    %v190 = vadd.s32 %v180, %v185
    %v191 = vadd.s32 %v181, %v185
    %v192 = vadd.s32 %v182, %v185
    %v193 = vadd.s32 %v183, %v185
    %vm194 = vcmp.lt.s32.totalorder %v186, 1024
    %vm195 = vcmp.lt.s32.totalorder %v187, 1024
    %vm196 = vcmp.lt.s32.totalorder %v188, 1024
    %vm197 = vcmp.lt.s32.totalorder %v189, 1024
    %vm198 = vcmp.lt.s32.totalorder %v190, 1024
    %vm199 = vcmp.lt.s32.totalorder %v191, 1024
    %vm200 = vcmp.lt.s32.totalorder %v192, 1024
    %vm201 = vcmp.lt.s32.totalorder %v193, 1024
    %v202 = vsel %vm194, 1, 0
    %v203 = vsel %vm195, 1, 0
    %v204 = vsel %vm196, 1, 0
    %v205 = vsel %vm197, 1, 0
    %v206 = vsel %vm198, 1, 0
    %v207 = vsel %vm199, 1, 0
    %v208 = vsel %vm200, 1, 0
    %v209 = vsel %vm201, 1, 0
    %v210 = vcvt.s32.f32 %v202
    %v211 = vcvt.s32.f32 %v203
    %v212 = vcvt.s32.f32 %v204
    %v213 = vcvt.s32.f32 %v205
    %v214 = vcvt.s32.f32 %v206
    %v215 = vcvt.s32.f32 %v207
    %v216 = vcvt.s32.f32 %v208
    %v217 = vcvt.s32.f32 %v209
    %218 = vst [vmem:[#allocation1] ss:$2 sm:$0xff] %v15
    %s219 = scalar_lea.vmem [#allocation1], 16
    %220 = vst [vmem:[%s219] ss:$2 sm:$0xff] %v16
    %s221 = scalar_lea.vmem [#allocation1], 32
    %222 = vst [vmem:[%s221] ss:$2 sm:$0xff] %v17
    %s223 = scalar_lea.vmem [#allocation1], 48
    %224 = vst [vmem:[%s223] ss:$2 sm:$0xff] %v18
    %v225 = vld.sshfl [vmem:[#allocation1] sm:$0xff pattern:$0x75316420]
    %v226 = vld.sshfl [vmem:[#allocation1 + $0x8] sm:$0xff pattern:$0x75316420]
    %v227 = vld.sshfl [vmem:[#allocation1 + $0x10] sm:$0xff pattern:$0x75316420]
    %v228 = vld.sshfl [vmem:[#allocation1 + $0x18] sm:$0xff pattern:$0x75316420]
    %v229 = vld.sshfl [vmem:[#allocation1 + $0x20] sm:$0xff pattern:$0x75316420]
    %v230 = vld.sshfl [vmem:[#allocation1 + $0x28] sm:$0xff pattern:$0x75316420]
    %v231 = vld.sshfl [vmem:[#allocation1 + $0x30] sm:$0xff pattern:$0x75316420]
    %v232 = vld.sshfl [vmem:[#allocation1 + $0x38] sm:$0xff pattern:$0x75316420]
    %v241 = vsel %vm141, %v225, -inf
    %v242 = vrot.slane %v241, 4
    %v243 = vmax.f32 %v241, %v242
    %v244 = vrot.slane %v243, 2
    %v245 = vmax.f32 %v243, %v244
    %v246 = vrot.slane %v245, 1
    %v247 = vmax.f32 %v245, %v246
    %v248 = vsel %vm141, %v226, -inf
    %v249 = vrot.slane %v248, 4
    %v250 = vmax.f32 %v248, %v249
    %v251 = vrot.slane %v250, 2
    %v252 = vmax.f32 %v250, %v251
    %v253 = vrot.slane %v252, 1
    %v254 = vmax.f32 %v252, %v253
    %v255 = vsel %vm141, %v227, -inf
    %v256 = vrot.slane %v255, 4
    %v257 = vmax.f32 %v255, %v256
    %v258 = vrot.slane %v257, 2
    %v259 = vmax.f32 %v257, %v258
    %v260 = vrot.slane %v259, 1
    %v261 = vmax.f32 %v259, %v260
    %v262 = vsel %vm141, %v228, -inf
    %v263 = vrot.slane %v262, 4
    %v264 = vmax.f32 %v262, %v263
    %v265 = vrot.slane %v264, 2
    %v266 = vmax.f32 %v264, %v265
    %v267 = vrot.slane %v266, 1
    %v268 = vmax.f32 %v266, %v267
    %v269 = vsel %vm141, %v229, -inf
    %v270 = vrot.slane %v269, 4
    %v271 = vmax.f32 %v269, %v270
    %v272 = vrot.slane %v271, 2
    %v273 = vmax.f32 %v271, %v272
    %v274 = vrot.slane %v273, 1
    %v275 = vmax.f32 %v273, %v274
    %v276 = vsel %vm141, %v230, -inf
    %v277 = vrot.slane %v276, 4
    %v278 = vmax.f32 %v276, %v277
    %v279 = vrot.slane %v278, 2
    %v280 = vmax.f32 %v278, %v279
    %v281 = vrot.slane %v280, 1
    %v282 = vmax.f32 %v280, %v281
    %v283 = vsel %vm141, %v231, -inf
    %v284 = vrot.slane %v283, 4
    %v285 = vmax.f32 %v283, %v284
    %v286 = vrot.slane %v285, 2
    %v287 = vmax.f32 %v285, %v286
    %v288 = vrot.slane %v287, 1
    %v289 = vmax.f32 %v287, %v288
    %v290 = vsel %vm141, %v232, -inf
    %v291 = vrot.slane %v290, 4
    %v292 = vmax.f32 %v290, %v291
    %v293 = vrot.slane %v292, 2
    %v294 = vmax.f32 %v292, %v293
    %v295 = vrot.slane %v294, 1
    %v296 = vmax.f32 %v294, %v295
    %v305 = vrot.slane %v254, 4
    %v306 = vrot.slane %v268, 4
    %v307 = vrot.slane %v282, 4
    %v308 = vrot.slane %v296, 4
    %v309 = vsel %vm141, %v247, %v305
    %v310 = vsel %vm141, %v261, %v306
    %v311 = vsel %vm141, %v275, %v307
    %v312 = vsel %vm141, %v289, %v308
    %v317 = vsub.f32 %v15, %v309
    %v318 = vsub.f32 %v16, %v310
    %v319 = vsub.f32 %v17, %v311
    %v320 = vsub.f32 %v18, %v312
    %v321 = vmul.f32 %v317, 1.442695
    %v322 = vpow.pop %v321
    %v323 = vmul.f32 %v318, 1.442695
    %v324 = vpow.pop %v323
    %v325 = vmul.f32 %v319, 1.442695
    %v326 = vpow.pop %v325
    %v327 = vmul.f32 %v320, 1.442695
    %v328 = vpow.pop %v327
    %333 = vst [vmem:[#allocation1] ss:$2 sm:$0xff] %v322
    %s334 = scalar_lea.vmem [#allocation1], 16
    %335 = vst [vmem:[%s334] ss:$2 sm:$0xff] %v324
    %s336 = scalar_lea.vmem [#allocation1], 32
    %337 = vst [vmem:[%s336] ss:$2 sm:$0xff] %v326
    %s338 = scalar_lea.vmem [#allocation1], 48
    %339 = vst [vmem:[%s338] ss:$2 sm:$0xff] %v328
    %v340 = vld.sshfl [vmem:[#allocation1] sm:$0xff pattern:$0x75316420]
    %v341 = vld.sshfl [vmem:[#allocation1 + $0x8] sm:$0xff pattern:$0x75316420]
    %v342 = vld.sshfl [vmem:[#allocation1 + $0x10] sm:$0xff pattern:$0x75316420]
    %v343 = vld.sshfl [vmem:[#allocation1 + $0x18] sm:$0xff pattern:$0x75316420]
    %v344 = vld.sshfl [vmem:[#allocation1 + $0x20] sm:$0xff pattern:$0x75316420]
    %v345 = vld.sshfl [vmem:[#allocation1 + $0x28] sm:$0xff pattern:$0x75316420]
    %v346 = vld.sshfl [vmem:[#allocation1 + $0x30] sm:$0xff pattern:$0x75316420]
    %v347 = vld.sshfl [vmem:[#allocation1 + $0x38] sm:$0xff pattern:$0x75316420]
    %v356 = vsel %vm141, %v340, 0.0
    %v357 = vrot.slane %v356, 4
    %v358 = vadd.f32 %v356, %v357
    %v359 = vrot.slane %v358, 2
    %v360 = vadd.f32 %v358, %v359
    %v361 = vrot.slane %v360, 1
    %v362 = vadd.f32 %v360, %v361
    %v363 = vsel %vm141, %v341, 0.0
    %v364 = vrot.slane %v363, 4
    %v365 = vadd.f32 %v363, %v364
    %v366 = vrot.slane %v365, 2
    %v367 = vadd.f32 %v365, %v366
    %v368 = vrot.slane %v367, 1
    %v369 = vadd.f32 %v367, %v368
    %v370 = vsel %vm141, %v342, 0.0
    %v371 = vrot.slane %v370, 4
    %v372 = vadd.f32 %v370, %v371
    %v373 = vrot.slane %v372, 2
    %v374 = vadd.f32 %v372, %v373
    %v375 = vrot.slane %v374, 1
    %v376 = vadd.f32 %v374, %v375
    %v377 = vsel %vm141, %v343, 0.0
    %v378 = vrot.slane %v377, 4
    %v379 = vadd.f32 %v377, %v378
    %v380 = vrot.slane %v379, 2
    %v381 = vadd.f32 %v379, %v380
    %v382 = vrot.slane %v381, 1
    %v383 = vadd.f32 %v381, %v382
    %v384 = vsel %vm141, %v344, 0.0
    %v385 = vrot.slane %v384, 4
    %v386 = vadd.f32 %v384, %v385
    %v387 = vrot.slane %v386, 2
    %v388 = vadd.f32 %v386, %v387
    %v389 = vrot.slane %v388, 1
    %v390 = vadd.f32 %v388, %v389
    %v391 = vsel %vm141, %v345, 0.0
    %v392 = vrot.slane %v391, 4
    %v393 = vadd.f32 %v391, %v392
    %v394 = vrot.slane %v393, 2
    %v395 = vadd.f32 %v393, %v394
    %v396 = vrot.slane %v395, 1
    %v397 = vadd.f32 %v395, %v396
    %v398 = vsel %vm141, %v346, 0.0
    %v399 = vrot.slane %v398, 4
    %v400 = vadd.f32 %v398, %v399
    %v401 = vrot.slane %v400, 2
    %v402 = vadd.f32 %v400, %v401
    %v403 = vrot.slane %v402, 1
    %v404 = vadd.f32 %v402, %v403
    %v405 = vsel %vm141, %v347, 0.0
    %v406 = vrot.slane %v405, 4
    %v407 = vadd.f32 %v405, %v406
    %v408 = vrot.slane %v407, 2
    %v409 = vadd.f32 %v407, %v408
    %v410 = vrot.slane %v409, 1
    %v411 = vadd.f32 %v409, %v410
    %v412 = vlog2.pop %v362
    %v413 = vmul.f32 %v412, 0.6931472
    %v414 = vlog2.pop %v369
    %v415 = vmul.f32 %v414, 0.6931472
    %v416 = vlog2.pop %v376
    %v417 = vmul.f32 %v416, 0.6931472
    %v418 = vlog2.pop %v383
    %v419 = vmul.f32 %v418, 0.6931472
    %v420 = vlog2.pop %v390
    %v421 = vmul.f32 %v420, 0.6931472
    %v422 = vlog2.pop %v397
    %v423 = vmul.f32 %v422, 0.6931472
    %v424 = vlog2.pop %v404
    %v425 = vmul.f32 %v424, 0.6931472
    %v426 = vlog2.pop %v411
    %v427 = vmul.f32 %v426, 0.6931472
    %v428 = vadd.f32 %v247, %v413
    %v429 = vadd.f32 %v254, %v415
    %v430 = vadd.f32 %v261, %v417
    %v431 = vadd.f32 %v268, %v419
    %v432 = vadd.f32 %v275, %v421
    %v433 = vadd.f32 %v282, %v423
    %v434 = vadd.f32 %v289, %v425
    %v435 = vadd.f32 %v296, %v427
    %436 = vst [vmem:[#allocation1] ss:$2 sm:$0xff] %v15
    %s437 = scalar_lea.vmem [#allocation1], 16
    %438 = vst [vmem:[%s437] ss:$2 sm:$0xff] %v16
    %s439 = scalar_lea.vmem [#allocation1], 32
    %440 = vst [vmem:[%s439] ss:$2 sm:$0xff] %v17
    %s441 = scalar_lea.vmem [#allocation1], 48
    %442 = vst [vmem:[%s441] ss:$2 sm:$0xff] %v18
    %v443 = vld.sshfl [vmem:[#allocation1] sm:$0xff pattern:$0x75316420]
    %v444 = vld.sshfl [vmem:[#allocation1 + $0x8] sm:$0xff pattern:$0x75316420]
    %v445 = vld.sshfl [vmem:[#allocation1 + $0x10] sm:$0xff pattern:$0x75316420]
    %v446 = vld.sshfl [vmem:[#allocation1 + $0x18] sm:$0xff pattern:$0x75316420]
    %v447 = vld.sshfl [vmem:[#allocation1 + $0x20] sm:$0xff pattern:$0x75316420]
    %v448 = vld.sshfl [vmem:[#allocation1 + $0x28] sm:$0xff pattern:$0x75316420]
    %v449 = vld.sshfl [vmem:[#allocation1 + $0x30] sm:$0xff pattern:$0x75316420]
    %v450 = vld.sshfl [vmem:[#allocation1 + $0x38] sm:$0xff pattern:$0x75316420]
    %v459 = vmul.f32 %v54, %v443
    %v460 = vmul.f32 %v55, %v444
    %v461 = vmul.f32 %v56, %v445
    %v462 = vmul.f32 %v57, %v446
    %v463 = vmul.f32 %v58, %v447
    %v464 = vmul.f32 %v59, %v448
    %v465 = vmul.f32 %v60, %v449
    %v466 = vmul.f32 %v61, %v450
    %v467 = vsel %vm141, %v459, 0.0
    %v468 = vrot.slane %v467, 4
    %v469 = vadd.f32 %v467, %v468
    %v470 = vrot.slane %v469, 2
    %v471 = vadd.f32 %v469, %v470
    %v472 = vrot.slane %v471, 1
    %v473 = vadd.f32 %v471, %v472
    %v474 = vsel %vm141, %v460, 0.0
    %v475 = vrot.slane %v474, 4
    %v476 = vadd.f32 %v474, %v475
    %v477 = vrot.slane %v476, 2
    %v478 = vadd.f32 %v476, %v477
    %v479 = vrot.slane %v478, 1
    %v480 = vadd.f32 %v478, %v479
    %v481 = vsel %vm141, %v461, 0.0
    %v482 = vrot.slane %v481, 4
    %v483 = vadd.f32 %v481, %v482
    %v484 = vrot.slane %v483, 2
    %v485 = vadd.f32 %v483, %v484
    %v486 = vrot.slane %v485, 1
    %v487 = vadd.f32 %v485, %v486
    %v488 = vsel %vm141, %v462, 0.0
    %v489 = vrot.slane %v488, 4
    %v490 = vadd.f32 %v488, %v489
    %v491 = vrot.slane %v490, 2
    %v492 = vadd.f32 %v490, %v491
    %v493 = vrot.slane %v492, 1
    %v494 = vadd.f32 %v492, %v493
    %v495 = vsel %vm141, %v463, 0.0
    %v496 = vrot.slane %v495, 4
    %v497 = vadd.f32 %v495, %v496
    %v498 = vrot.slane %v497, 2
    %v499 = vadd.f32 %v497, %v498
    %v500 = vrot.slane %v499, 1
    %v501 = vadd.f32 %v499, %v500
    %v502 = vsel %vm141, %v464, 0.0
    %v503 = vrot.slane %v502, 4
    %v504 = vadd.f32 %v502, %v503
    %v505 = vrot.slane %v504, 2
    %v506 = vadd.f32 %v504, %v505
    %v507 = vrot.slane %v506, 1
    %v508 = vadd.f32 %v506, %v507
    %v509 = vsel %vm141, %v465, 0.0
    %v510 = vrot.slane %v509, 4
    %v511 = vadd.f32 %v509, %v510
    %v512 = vrot.slane %v511, 2
    %v513 = vadd.f32 %v511, %v512
    %v514 = vrot.slane %v513, 1
    %v515 = vadd.f32 %v513, %v514
    %v516 = vsel %vm141, %v466, 0.0
    %v517 = vrot.slane %v516, 4
    %v518 = vadd.f32 %v516, %v517
    %v519 = vrot.slane %v518, 2
    %v520 = vadd.f32 %v518, %v519
    %v521 = vrot.slane %v520, 1
    %v522 = vadd.f32 %v520, %v521
    %v523 = vld [vmem:[#allocation2] sm:$0x1]
    %v524 = vsub.f32 %v428, %v473
    %v525 = vsub.f32 %v429, %v480
    %v526 = vsub.f32 %v430, %v487
    %v527 = vsub.f32 %v431, %v494
    %v528 = vsub.f32 %v432, %v501
    %v529 = vsub.f32 %v433, %v508
    %v530 = vsub.f32 %v434, %v515
    %v531 = vsub.f32 %v435, %v522
    %v532 = vmul.f32 %v524, %v210
    %v533 = vmul.f32 %v525, %v211
    %v534 = vmul.f32 %v526, %v212
    %v535 = vmul.f32 %v527, %v213
    %v536 = vmul.f32 %v528, %v214
    %v537 = vmul.f32 %v529, %v215
    %v538 = vmul.f32 %v530, %v216
    %v539 = vmul.f32 %v531, %v217
    %vm540 = vcmask 1040384
    %v541 = vsel %vm540, %v532, 0.0
    %v542 = vsel %vm540, %v533, 0.0
    %v543 = vadd.f32 %v541, %v542
    %v544 = vsel %vm540, %v534, 0.0
    %v545 = vadd.f32 %v543, %v544
    %v546 = vsel %vm540, %v535, 0.0
    %v547 = vadd.f32 %v545, %v546
    %v548 = vsel %vm540, %v536, 0.0
    %v549 = vadd.f32 %v547, %v548
    %v550 = vsel %vm540, %v537, 0.0
    %v551 = vadd.f32 %v549, %v550
    %v552 = vsel %vm540, %v538, 0.0
    %v553 = vadd.f32 %v551, %v552
    %v554 = vsel %vm540, %v539, 0.0
    %v555 = vadd.f32 %v553, %v554
    %556 = vadd.xlane.f32.xlu0 %v555
    %v557 = vpop.xlane.xlu0 %556
    %v558 = vrot.slane %v557, 4
    %v559 = vadd.f32 %v557, %v558
    %v560 = vrot.slane %v559, 2
    %v561 = vadd.f32 %v559, %v560
    %v562 = vrot.slane %v561, 1
    %v563 = vadd.f32 %v561, %v562
    %s564 = vtos %v563
    %v565 = vstv %s564
    %v566 = vadd.f32 %v523, %v565
    %vm567 = vcmask 0
    %568 = vst.msk [vmem:[#allocation2] sm:$0x1] %vm567, %v566
    // Predicated region
    $region14: #{ce_iou_loss.2} parent=1 // pred_check
      %p569 = pneg %p20
    $region15: #{ce_iou_loss.2} parent=1 // pred_check_branch
      %571 = sbr.rel (%p569) target = $region17
    $region16: #{ce_iou_loss.2} parent=1 // pred_region
      %v572 = vld [vmem:[#allocation2] sm:$0x1]
      %v573 = vrcp.pop 1024.0
      %v574 = vmul.f32 1024.0, %v573
      %v575 = vsub.f32 1.0, %v574
      %v576 = vmul.f32 %v573, %v575
      %v577 = vadd.f32 %v573, %v576
      %vm578 = vweird.f32 %v573
      %v579 = vsel %vm578, %v573, %v577
      %v580 = vmul.f32 %v572, %v579
      %581 = vst.msk [vmem:[#allocation2] sm:$0x1] %vm567, %v580
    $region17: #{ce_iou_loss.2} parent=1 // pred_fallthru
      _
    // Predicated region
    $region18: #{ce_iou_loss.2} parent=1 // pred_check
      _
    $region19: #{ce_iou_loss.2} parent=1 // pred_check_branch
      %583 = sbr.rel (0) target = $region21
    $region20: #{ce_iou_loss.2} parent=1 // pred_region
      _
    $region21: #{ce_iou_loss.2} parent=1 // pred_fallthru
      _
    // Predicated region
    $region22: #{ce_iou_loss.2} parent=1 // pred_check
      _
    $region23: #{ce_iou_loss.2} parent=1 // pred_check_branch
      %585 = sbr.rel (0) target = $region25
    $region24: #{ce_iou_loss.2} parent=1 // pred_region
      _
    $region25: #{ce_iou_loss.2} parent=1 // pred_fallthru
      _
    // Predicated region
    $region26: #{ce_iou_loss.2} parent=1 // pred_check
      _
    $region27: #{ce_iou_loss.2} parent=1 // pred_check_branch
      %587 = sbr.rel (0) target = $region29
    $region28: #{ce_iou_loss.2} parent=1 // pred_region
      %589 = vsyncadd [#allocation3], 0
      %s591 = sshll.u32 [#allocation2], 4
      %s592 = int_to_ptr.vmem [resolvable:$true] %s591
      %s593 = sshll.u32 %s4, 4
      %s594 = int_to_ptr.hbm [resolvable:$true] %s593
      %596 = dma.vmem_to_hbm [thread:$0]  %s592, 16, %s594, [#allocation3]
    $region29: #{ce_iou_loss.2} parent=1 // pred_fallthru
      _
    // Predicated region
    $region30: #{ce_iou_loss.2} parent=1 // pred_check
      _
    $region31: #{ce_iou_loss.2} parent=1 // pred_check_branch
      %598 = sbr.rel (0) target = $region33
    $region32: #{ce_iou_loss.2} parent=1 // pred_region
      _
    $region33: #{ce_iou_loss.2} parent=1 // pred_fallthru
      _
    // Predicated region
    $region34: #{ce_iou_loss.2} parent=1 // pred_check
      _
    $region35: #{ce_iou_loss.2} parent=1 // pred_check_branch
      %600 = sbr.rel (0) target = $region37
    $region36: #{ce_iou_loss.2} parent=1 // pred_region
      _
    $region37: #{ce_iou_loss.2} parent=1 // pred_fallthru
      _
    // Predicated region
    $region38: #{ce_iou_loss.2} parent=1 // pred_check
      _
    $region39: #{ce_iou_loss.2} parent=1 // pred_check_branch
      %602 = sbr.rel (0) target = $region41
    $region40: #{ce_iou_loss.2} parent=1 // pred_region
      %604 = dma.done [#allocation3], 16
    $region41: #{ce_iou_loss.2} parent=1 // pred_fallthru
      _
    %605 = vsyncpa [#allocation3], 1

// kernel: ce_iou_loss.3
$region0: #{ce_iou_loss.3}
  #allocation0 [shape = 'u32[]', space=smem, size = 0x4, offset = 0x4, fixed_abs, tag = 'smem constant byte address 0x4 - core index']
  #allocation1 [shape = 'u32[72,128]{1,0:T(1,128)}', space=vmem, size = 0x9000, scoped, tag = 'internal scratch']
  #allocation2 [shape = 'f32[4,1]{1,0:T(4,128)}', space=vmem, size = 0x800, scoped, tag = 'scratch operand']
  #allocation3 [shape = 'f32[4,1]{1,0:T(4,128)}', space=vmem, size = 0x800, scoped, tag = 'scratch operand']
  #allocation4 [shape = 'bf16[256,256]{1,0:T(8,128)(2,1)}', space=vmem, size = 0x20000, scoped, tag = 'scratch operand']
  %s0 = inlined_call_operand.vmem [shape: f32[4,1024], index: 0, kind: input, shape index: {}]
  %s1 = inlined_call_operand.vmem [shape: f32[4,1], index: 1, kind: input, shape index: {}]
  %s2 = inlined_call_operand.hbm [shape: f32[1,1], index: 2, kind: output, shape index: {}]
  %s3 = sld [smem:[#allocation0]]
  $region26: #{ce_iou_loss.3} parent=0
    _
  %s5 = ssub.s32 1, %s3
  %s6 = scalar_select 0, %s5, %s3
  $region1: #{ce_iou_loss.3} parent=0
    #allocation5 [shape = 'u8[512]{0}', space=vmem, size = 0x400, scoped, tag = 'output window, operand 0, single buffered']
    #allocation6 [shape = 's32[1]{0}', space=sflag, size = 0x4, scoped, tag = 'scoped memory for ce_iou_loss.3']
    %7 = vsyncpa [#allocation6], 0
    // Predicated region
    $region2: #{ce_iou_loss.3} parent=1 // pred_check
      _
    $region3: #{ce_iou_loss.3} parent=1 // pred_check_branch
      %9 = sbr.rel (0) target = $region5
    $region4: #{ce_iou_loss.3} parent=1 // pred_region
      _
    $region5: #{ce_iou_loss.3} parent=1 // pred_fallthru
      _
    // Predicated region
    $region6: #{ce_iou_loss.3} parent=1 // pred_check
      _
    $region7: #{ce_iou_loss.3} parent=1 // pred_check_branch
      %11 = sbr.rel (0) target = $region9
    $region8: #{ce_iou_loss.3} parent=1 // pred_region
      _
    $region9: #{ce_iou_loss.3} parent=1 // pred_fallthru
      _
    %p12 = scmp.eq.s32.totalorder 0, 0
    // Predicated region
    $region10: #{ce_iou_loss.3} parent=1 // pred_check
      %p13 = pneg %p12
    $region11: #{ce_iou_loss.3} parent=1 // pred_check_branch
      %15 = sbr.rel (%p13) target = $region13
    $region12: #{ce_iou_loss.3} parent=1 // pred_region
      %vm16 = vcmask 3072
      %17 = vst.msk [vmem:[#allocation2] sm:$0xf] %vm16, 0.0
      %18 = vst.msk [vmem:[#allocation3] sm:$0xf] %vm16, 0.0
      %v19 = vlaneseq
      %v20 = vshrl.u32 %v19, 7
      %v21 = vadd.s32 %v20, 8
      %v22 = vadd.s32 %v20, 16
      %v23 = vadd.s32 %v20, 24
      %v24 = vadd.s32 %v20, 32
      %v25 = vadd.s32 %v20, 40
      %v26 = vadd.s32 %v20, 48
      %v27 = vadd.s32 %v20, 56
      %v28 = vadd.s32 %v20, 64
      %v29 = vadd.s32 %v20, 72
      %v30 = vadd.s32 %v20, 80
      %v31 = vadd.s32 %v20, 88
      %v32 = vadd.s32 %v20, 96
      %v33 = vadd.s32 %v20, 104
      %v34 = vadd.s32 %v20, 112
      %v35 = vadd.s32 %v20, 120
      %v36 = vadd.s32 %v20, 128
      %v37 = vadd.s32 %v20, 136
      %v38 = vadd.s32 %v20, 144
      %v39 = vadd.s32 %v20, 152
      %v40 = vadd.s32 %v20, 160
      %v41 = vadd.s32 %v20, 168
      %v42 = vadd.s32 %v20, 176
      %v43 = vadd.s32 %v20, 184
      %v44 = vadd.s32 %v20, 192
      %v45 = vadd.s32 %v20, 200
      %v46 = vadd.s32 %v20, 208
      %v47 = vadd.s32 %v20, 216
      %v48 = vadd.s32 %v20, 224
      %v49 = vadd.s32 %v20, 232
      %v50 = vadd.s32 %v20, 240
      %v51 = vadd.s32 %v20, 248
      %v52 = vlaneseq
      %v53 = vand.u32 %v52, 127
      %v54 = vadd.s32 %v53, 128
      %vm55 = vcmp.le.s32.totalorder %v20, %v53
      %vm56 = vcmp.le.s32.totalorder %v20, %v54
      %vm57 = vcmp.le.s32.totalorder %v21, %v53
      %vm58 = vcmp.le.s32.totalorder %v21, %v54
      %vm59 = vcmp.le.s32.totalorder %v22, %v53
      %vm60 = vcmp.le.s32.totalorder %v22, %v54
      %vm61 = vcmp.le.s32.totalorder %v23, %v53
      %vm62 = vcmp.le.s32.totalorder %v23, %v54
      %vm63 = vcmp.le.s32.totalorder %v24, %v53
      %vm64 = vcmp.le.s32.totalorder %v24, %v54
      %vm65 = vcmp.le.s32.totalorder %v25, %v53
      %vm66 = vcmp.le.s32.totalorder %v25, %v54
      %vm67 = vcmp.le.s32.totalorder %v26, %v53
      %vm68 = vcmp.le.s32.totalorder %v26, %v54
      %vm69 = vcmp.le.s32.totalorder %v27, %v53
      %vm70 = vcmp.le.s32.totalorder %v27, %v54
      %vm71 = vcmp.le.s32.totalorder %v28, %v53
      %vm72 = vcmp.le.s32.totalorder %v28, %v54
      %vm73 = vcmp.le.s32.totalorder %v29, %v53
      %vm74 = vcmp.le.s32.totalorder %v29, %v54
      %vm75 = vcmp.le.s32.totalorder %v30, %v53
      %vm76 = vcmp.le.s32.totalorder %v30, %v54
      %vm77 = vcmp.le.s32.totalorder %v31, %v53
      %vm78 = vcmp.le.s32.totalorder %v31, %v54
      %vm79 = vcmp.le.s32.totalorder %v32, %v53
      %vm80 = vcmp.le.s32.totalorder %v32, %v54
      %vm81 = vcmp.le.s32.totalorder %v33, %v53
      %vm82 = vcmp.le.s32.totalorder %v33, %v54
      %vm83 = vcmp.le.s32.totalorder %v34, %v53
      %vm84 = vcmp.le.s32.totalorder %v34, %v54
      %vm85 = vcmp.le.s32.totalorder %v35, %v53
      %vm86 = vcmp.le.s32.totalorder %v35, %v54
      %vm87 = vcmp.le.s32.totalorder %v36, %v53
      %vm88 = vcmp.le.s32.totalorder %v36, %v54
      %vm89 = vcmp.le.s32.totalorder %v37, %v53
      %vm90 = vcmp.le.s32.totalorder %v37, %v54
      %vm91 = vcmp.le.s32.totalorder %v38, %v53
      %vm92 = vcmp.le.s32.totalorder %v38, %v54
      %vm93 = vcmp.le.s32.totalorder %v39, %v53
      %vm94 = vcmp.le.s32.totalorder %v39, %v54
      %vm95 = vcmp.le.s32.totalorder %v40, %v53
      %vm96 = vcmp.le.s32.totalorder %v40, %v54
      %vm97 = vcmp.le.s32.totalorder %v41, %v53
      %vm98 = vcmp.le.s32.totalorder %v41, %v54
      %vm99 = vcmp.le.s32.totalorder %v42, %v53
      %vm100 = vcmp.le.s32.totalorder %v42, %v54
      %vm101 = vcmp.le.s32.totalorder %v43, %v53
      %vm102 = vcmp.le.s32.totalorder %v43, %v54
      %vm103 = vcmp.le.s32.totalorder %v44, %v53
      %vm104 = vcmp.le.s32.totalorder %v44, %v54
      %vm105 = vcmp.le.s32.totalorder %v45, %v53
      %vm106 = vcmp.le.s32.totalorder %v45, %v54
      %vm107 = vcmp.le.s32.totalorder %v46, %v53
      %vm108 = vcmp.le.s32.totalorder %v46, %v54
      %vm109 = vcmp.le.s32.totalorder %v47, %v53
      %vm110 = vcmp.le.s32.totalorder %v47, %v54
      %vm111 = vcmp.le.s32.totalorder %v48, %v53
      %vm112 = vcmp.le.s32.totalorder %v48, %v54
      %vm113 = vcmp.le.s32.totalorder %v49, %v53
      %vm114 = vcmp.le.s32.totalorder %v49, %v54
      %vm115 = vcmp.le.s32.totalorder %v50, %v53
      %vm116 = vcmp.le.s32.totalorder %v50, %v54
      %vm117 = vcmp.le.s32.totalorder %v51, %v53
      %vm118 = vcmp.le.s32.totalorder %v51, %v54
      %v119 = vsel %vm55, 1, 0
      %v120 = vsel %vm56, 1, 0
      %v121 = vsel %vm57, 1, 0
      %v122 = vsel %vm58, 1, 0
      %v123 = vsel %vm59, 1, 0
      %v124 = vsel %vm60, 1, 0
      %v125 = vsel %vm61, 1, 0
      %v126 = vsel %vm62, 1, 0
      %v127 = vsel %vm63, 1, 0
      %v128 = vsel %vm64, 1, 0
      %v129 = vsel %vm65, 1, 0
      %v130 = vsel %vm66, 1, 0
      %v131 = vsel %vm67, 1, 0
      %v132 = vsel %vm68, 1, 0
      %v133 = vsel %vm69, 1, 0
      %v134 = vsel %vm70, 1, 0
      %v135 = vsel %vm71, 1, 0
      %v136 = vsel %vm72, 1, 0
      %v137 = vsel %vm73, 1, 0
      %v138 = vsel %vm74, 1, 0
      %v139 = vsel %vm75, 1, 0
      %v140 = vsel %vm76, 1, 0
      %v141 = vsel %vm77, 1, 0
      %v142 = vsel %vm78, 1, 0
      %v143 = vsel %vm79, 1, 0
      %v144 = vsel %vm80, 1, 0
      %v145 = vsel %vm81, 1, 0
      %v146 = vsel %vm82, 1, 0
      %v147 = vsel %vm83, 1, 0
      %v148 = vsel %vm84, 1, 0
      %v149 = vsel %vm85, 1, 0
      %v150 = vsel %vm86, 1, 0
      %v151 = vsel %vm87, 1, 0
      %v152 = vsel %vm88, 1, 0
      %v153 = vsel %vm89, 1, 0
      %v154 = vsel %vm90, 1, 0
      %v155 = vsel %vm91, 1, 0
      %v156 = vsel %vm92, 1, 0
      %v157 = vsel %vm93, 1, 0
      %v158 = vsel %vm94, 1, 0
      %v159 = vsel %vm95, 1, 0
      %v160 = vsel %vm96, 1, 0
      %v161 = vsel %vm97, 1, 0
      %v162 = vsel %vm98, 1, 0
      %v163 = vsel %vm99, 1, 0
      %v164 = vsel %vm100, 1, 0
      %v165 = vsel %vm101, 1, 0
      %v166 = vsel %vm102, 1, 0
      %v167 = vsel %vm103, 1, 0
      %v168 = vsel %vm104, 1, 0
      %v169 = vsel %vm105, 1, 0
      %v170 = vsel %vm106, 1, 0
      %v171 = vsel %vm107, 1, 0
      %v172 = vsel %vm108, 1, 0
      %v173 = vsel %vm109, 1, 0
      %v174 = vsel %vm110, 1, 0
      %v175 = vsel %vm111, 1, 0
      %v176 = vsel %vm112, 1, 0
      %v177 = vsel %vm113, 1, 0
      %v178 = vsel %vm114, 1, 0
      %v179 = vsel %vm115, 1, 0
      %v180 = vsel %vm116, 1, 0
      %v181 = vsel %vm117, 1, 0
      %v182 = vsel %vm118, 1, 0
      %v183 = vcvt.s32.f32 %v119
      %v184 = vcvt.s32.f32 %v120
      %v185 = vcvt.s32.f32 %v121
      %v186 = vcvt.s32.f32 %v122
      %v187 = vcvt.s32.f32 %v123
      %v188 = vcvt.s32.f32 %v124
      %v189 = vcvt.s32.f32 %v125
      %v190 = vcvt.s32.f32 %v126
      %v191 = vcvt.s32.f32 %v127
      %v192 = vcvt.s32.f32 %v128
      %v193 = vcvt.s32.f32 %v129
      %v194 = vcvt.s32.f32 %v130
      %v195 = vcvt.s32.f32 %v131
      %v196 = vcvt.s32.f32 %v132
      %v197 = vcvt.s32.f32 %v133
      %v198 = vcvt.s32.f32 %v134
      %v199 = vcvt.s32.f32 %v135
      %v200 = vcvt.s32.f32 %v136
      %v201 = vcvt.s32.f32 %v137
      %v202 = vcvt.s32.f32 %v138
      %v203 = vcvt.s32.f32 %v139
      %v204 = vcvt.s32.f32 %v140
      %v205 = vcvt.s32.f32 %v141
      %v206 = vcvt.s32.f32 %v142
      %v207 = vcvt.s32.f32 %v143
      %v208 = vcvt.s32.f32 %v144
      %v209 = vcvt.s32.f32 %v145
      %v210 = vcvt.s32.f32 %v146
      %v211 = vcvt.s32.f32 %v147
      %v212 = vcvt.s32.f32 %v148
      %v213 = vcvt.s32.f32 %v149
      %v214 = vcvt.s32.f32 %v150
      %v215 = vcvt.s32.f32 %v151
      %v216 = vcvt.s32.f32 %v152
      %v217 = vcvt.s32.f32 %v153
      %v218 = vcvt.s32.f32 %v154
      %v219 = vcvt.s32.f32 %v155
      %v220 = vcvt.s32.f32 %v156
      %v221 = vcvt.s32.f32 %v157
      %v222 = vcvt.s32.f32 %v158
      %v223 = vcvt.s32.f32 %v159
      %v224 = vcvt.s32.f32 %v160
      %v225 = vcvt.s32.f32 %v161
      %v226 = vcvt.s32.f32 %v162
      %v227 = vcvt.s32.f32 %v163
      %v228 = vcvt.s32.f32 %v164
      %v229 = vcvt.s32.f32 %v165
      %v230 = vcvt.s32.f32 %v166
      %v231 = vcvt.s32.f32 %v167
      %v232 = vcvt.s32.f32 %v168
      %v233 = vcvt.s32.f32 %v169
      %v234 = vcvt.s32.f32 %v170
      %v235 = vcvt.s32.f32 %v171
      %v236 = vcvt.s32.f32 %v172
      %v237 = vcvt.s32.f32 %v173
      %v238 = vcvt.s32.f32 %v174
      %v239 = vcvt.s32.f32 %v175
      %v240 = vcvt.s32.f32 %v176
      %v241 = vcvt.s32.f32 %v177
      %v242 = vcvt.s32.f32 %v178
      %v243 = vcvt.s32.f32 %v179
      %v244 = vcvt.s32.f32 %v180
      %v245 = vcvt.s32.f32 %v181
      %v246 = vcvt.s32.f32 %v182
      %v247 = vpack.c.bf16 %v184, %v183
      %v248 = vpack.c.bf16 %v186, %v185
      %v249 = vpack.c.bf16 %v188, %v187
      %v250 = vpack.c.bf16 %v190, %v189
      %v251 = vpack.c.bf16 %v192, %v191
      %v252 = vpack.c.bf16 %v194, %v193
      %v253 = vpack.c.bf16 %v196, %v195
      %v254 = vpack.c.bf16 %v198, %v197
      %v255 = vpack.c.bf16 %v200, %v199
      %v256 = vpack.c.bf16 %v202, %v201
      %v257 = vpack.c.bf16 %v204, %v203
      %v258 = vpack.c.bf16 %v206, %v205
      %v259 = vpack.c.bf16 %v208, %v207
      %v260 = vpack.c.bf16 %v210, %v209
      %v261 = vpack.c.bf16 %v212, %v211
      %v262 = vpack.c.bf16 %v214, %v213
      %v263 = vpack.c.bf16 %v216, %v215
      %v264 = vpack.c.bf16 %v218, %v217
      %v265 = vpack.c.bf16 %v220, %v219
      %v266 = vpack.c.bf16 %v222, %v221
      %v267 = vpack.c.bf16 %v224, %v223
      %v268 = vpack.c.bf16 %v226, %v225
      %v269 = vpack.c.bf16 %v228, %v227
      %v270 = vpack.c.bf16 %v230, %v229
      %v271 = vpack.c.bf16 %v232, %v231
      %v272 = vpack.c.bf16 %v234, %v233
      %v273 = vpack.c.bf16 %v236, %v235
      %v274 = vpack.c.bf16 %v238, %v237
      %v275 = vpack.c.bf16 %v240, %v239
      %v276 = vpack.c.bf16 %v242, %v241
      %v277 = vpack.c.bf16 %v244, %v243
      %v278 = vpack.c.bf16 %v246, %v245
      %279 = vst [vmem:[#allocation4] sm:$0xff] %v247
      %280 = vst [vmem:[#allocation4 + $0x8] sm:$0xff] %v248
      %281 = vst [vmem:[#allocation4 + $0x10] sm:$0xff] %v249
      %282 = vst [vmem:[#allocation4 + $0x18] sm:$0xff] %v250
      %283 = vst [vmem:[#allocation4 + $0x20] sm:$0xff] %v251
      %284 = vst [vmem:[#allocation4 + $0x28] sm:$0xff] %v252
      %285 = vst [vmem:[#allocation4 + $0x30] sm:$0xff] %v253
      %286 = vst [vmem:[#allocation4 + $0x38] sm:$0xff] %v254
      %287 = vst [vmem:[#allocation4 + $0x40] sm:$0xff] %v255
      %288 = vst [vmem:[#allocation4 + $0x48] sm:$0xff] %v256
      %289 = vst [vmem:[#allocation4 + $0x50] sm:$0xff] %v257
      %290 = vst [vmem:[#allocation4 + $0x58] sm:$0xff] %v258
      %291 = vst [vmem:[#allocation4 + $0x60] sm:$0xff] %v259
      %292 = vst [vmem:[#allocation4 + $0x68] sm:$0xff] %v260
      %293 = vst [vmem:[#allocation4 + $0x70] sm:$0xff] %v261
      %294 = vst [vmem:[#allocation4 + $0x78] sm:$0xff] %v262
      %295 = vst [vmem:[#allocation4 + $0x80] sm:$0xff] %v263
      %296 = vst [vmem:[#allocation4 + $0x88] sm:$0xff] %v264
      %297 = vst [vmem:[#allocation4 + $0x90] sm:$0xff] %v265
      %298 = vst [vmem:[#allocation4 + $0x98] sm:$0xff] %v266
      %299 = vst [vmem:[#allocation4 + $0xa0] sm:$0xff] %v267
      %300 = vst [vmem:[#allocation4 + $0xa8] sm:$0xff] %v268
      %301 = vst [vmem:[#allocation4 + $0xb0] sm:$0xff] %v269
      %302 = vst [vmem:[#allocation4 + $0xb8] sm:$0xff] %v270
      %303 = vst [vmem:[#allocation4 + $0xc0] sm:$0xff] %v271
      %304 = vst [vmem:[#allocation4 + $0xc8] sm:$0xff] %v272
      %305 = vst [vmem:[#allocation4 + $0xd0] sm:$0xff] %v273
      %306 = vst [vmem:[#allocation4 + $0xd8] sm:$0xff] %v274
      %307 = vst [vmem:[#allocation4 + $0xe0] sm:$0xff] %v275
      %308 = vst [vmem:[#allocation4 + $0xe8] sm:$0xff] %v276
      %309 = vst [vmem:[#allocation4 + $0xf0] sm:$0xff] %v277
      %310 = vst [vmem:[#allocation4 + $0xf8] sm:$0xff] %v278
    $region13: #{ce_iou_loss.3} parent=1 // pred_fallthru
      _
    %v311 = vld [vmem:[%s1] sm:$0xf]
    %v312 = vlaneseq
    %v313 = vand.u32 %v312, 127
    %v314 = vadd.s32 %v313, 128
    %s315 = smul.u32 0, 1024
    %v316 = vstv %s315
    %v317 = vadd.s32 %v313, %v316
    %v318 = vadd.s32 %v314, %v316
    %v319 = vld [vmem:[#allocation2] sm:$0xf]
    %v320 = vld [vmem:[%s0] sm:$0xff]
    %322 = vst [vmem:[#allocation1] ss:$2 sm:$0xff] %v320
    %v323 = vld.sshfl [vmem:[#allocation1] sm:$0xff pattern:$0x75316420]
    %v324 = vld.sshfl [vmem:[#allocation1 + $0x8] sm:$0xff pattern:$0x75316420]
    %v325 = vand.u32 %v323, 1
    %v326 = vand.u32 %v324, 1
    %v327 = vshrl.u32 %v325, 16
    %v328 = vand.u32 %v325, 65535
    %v329 = vcvt.s32.f32 %v327
    %v330 = vmul.f32 %v329, 65536.0
    %v331 = vcvt.s32.f32 %v328
    %v332 = vadd.f32 %v330, %v331
    %v333 = vshrl.u32 %v326, 16
    %v334 = vand.u32 %v326, 65535
    %v335 = vcvt.s32.f32 %v333
    %v336 = vmul.f32 %v335, 65536.0
    %v337 = vcvt.s32.f32 %v334
    %v338 = vadd.f32 %v336, %v337
    %v339 = vand.u32 %v323, 2147483646
    %v340 = vand.u32 %v324, 2147483646
    %v343 = vpack.c.bf16 %v332, %v332
    %v344 = vpack.c.bf16 %v338, %v338
    %v345 = vld [vmem:[#allocation4] sm:$0xff]
    %v346 = vld [vmem:[#allocation4 + $0x8] sm:$0xff]
    %v347 = vld [vmem:[#allocation4 + $0x10] sm:$0xff]
    %v348 = vld [vmem:[#allocation4 + $0x18] sm:$0xff]
    %v349 = vld [vmem:[#allocation4 + $0x20] sm:$0xff]
    %v350 = vld [vmem:[#allocation4 + $0x28] sm:$0xff]
    %v351 = vld [vmem:[#allocation4 + $0x30] sm:$0xff]
    %v352 = vld [vmem:[#allocation4 + $0x38] sm:$0xff]
    %v353 = vld [vmem:[#allocation4 + $0x40] sm:$0xff]
    %v354 = vld [vmem:[#allocation4 + $0x48] sm:$0xff]
    %v355 = vld [vmem:[#allocation4 + $0x50] sm:$0xff]
    %v356 = vld [vmem:[#allocation4 + $0x58] sm:$0xff]
    %v357 = vld [vmem:[#allocation4 + $0x60] sm:$0xff]
    %v358 = vld [vmem:[#allocation4 + $0x68] sm:$0xff]
    %v359 = vld [vmem:[#allocation4 + $0x70] sm:$0xff]
    %v360 = vld [vmem:[#allocation4 + $0x78] sm:$0xff]
    %v361 = vld [vmem:[#allocation4 + $0x80] sm:$0xff]
    %v362 = vld [vmem:[#allocation4 + $0x88] sm:$0xff]
    %v363 = vld [vmem:[#allocation4 + $0x90] sm:$0xff]
    %v364 = vld [vmem:[#allocation4 + $0x98] sm:$0xff]
    %v365 = vld [vmem:[#allocation4 + $0xa0] sm:$0xff]
    %v366 = vld [vmem:[#allocation4 + $0xa8] sm:$0xff]
    %v367 = vld [vmem:[#allocation4 + $0xb0] sm:$0xff]
    %v368 = vld [vmem:[#allocation4 + $0xb8] sm:$0xff]
    %v369 = vld [vmem:[#allocation4 + $0xc0] sm:$0xff]
    %v370 = vld [vmem:[#allocation4 + $0xc8] sm:$0xff]
    %v371 = vld [vmem:[#allocation4 + $0xd0] sm:$0xff]
    %v372 = vld [vmem:[#allocation4 + $0xd8] sm:$0xff]
    %v373 = vld [vmem:[#allocation4 + $0xe0] sm:$0xff]
    %v374 = vld [vmem:[#allocation4 + $0xe8] sm:$0xff]
    %v375 = vld [vmem:[#allocation4 + $0xf0] sm:$0xff]
    %v376 = vld [vmem:[#allocation4 + $0xf8] sm:$0xff]
    %378 = vset.pattern.permute.xlu0 0
    %379 = vperm.xlu0 %378, %v319
    %v380 = vpop.permute.xlu0 %379
    %v414 = vunpack.c.l.b16 %v345
    %v415 = vunpack.c.h.b16 %v345
    %v416 = vunpack.c.l.b16 %v346
    %v417 = vunpack.c.h.b16 %v346
    %v418 = vunpack.c.l.b16 %v347
    %v419 = vunpack.c.h.b16 %v347
    %v420 = vunpack.c.l.b16 %v348
    %v421 = vunpack.c.h.b16 %v348
    %v422 = vunpack.c.l.b16 %v349
    %v423 = vunpack.c.h.b16 %v349
    %v424 = vunpack.c.l.b16 %v350
    %v425 = vunpack.c.h.b16 %v350
    %v426 = vunpack.c.l.b16 %v351
    %v427 = vunpack.c.h.b16 %v351
    %v428 = vunpack.c.l.b16 %v352
    %v429 = vunpack.c.h.b16 %v352
    %v430 = vunpack.c.l.b16 %v353
    %v431 = vunpack.c.h.b16 %v353
    %v432 = vunpack.c.l.b16 %v354
    %v433 = vunpack.c.h.b16 %v354
    %v434 = vunpack.c.l.b16 %v355
    %v435 = vunpack.c.h.b16 %v355
    %v436 = vunpack.c.l.b16 %v356
    %v437 = vunpack.c.h.b16 %v356
    %v438 = vunpack.c.l.b16 %v357
    %v439 = vunpack.c.h.b16 %v357
    %v440 = vunpack.c.l.b16 %v358
    %v441 = vunpack.c.h.b16 %v358
    %v442 = vunpack.c.l.b16 %v359
    %v443 = vunpack.c.h.b16 %v359
    %v444 = vunpack.c.l.b16 %v360
    %v445 = vunpack.c.h.b16 %v360
    %v446 = vunpack.c.l.b16 %v361
    %v447 = vunpack.c.h.b16 %v361
    %v448 = vunpack.c.l.b16 %v362
    %v449 = vunpack.c.h.b16 %v362
    %v450 = vunpack.c.l.b16 %v363
    %v451 = vunpack.c.h.b16 %v363
    %v452 = vunpack.c.l.b16 %v364
    %v453 = vunpack.c.h.b16 %v364
    %v454 = vunpack.c.l.b16 %v365
    %v455 = vunpack.c.h.b16 %v365
    %v456 = vunpack.c.l.b16 %v366
    %v457 = vunpack.c.h.b16 %v366
    %v458 = vunpack.c.l.b16 %v367
    %v459 = vunpack.c.h.b16 %v367
    %v460 = vunpack.c.l.b16 %v368
    %v461 = vunpack.c.h.b16 %v368
    %v462 = vunpack.c.l.b16 %v369
    %v463 = vunpack.c.h.b16 %v369
    %v464 = vunpack.c.l.b16 %v370
    %v465 = vunpack.c.h.b16 %v370
    %v466 = vunpack.c.l.b16 %v371
    %v467 = vunpack.c.h.b16 %v371
    %v468 = vunpack.c.l.b16 %v372
    %v469 = vunpack.c.h.b16 %v372
    %v470 = vunpack.c.l.b16 %v373
    %v471 = vunpack.c.h.b16 %v373
    %v472 = vunpack.c.l.b16 %v374
    %v473 = vunpack.c.h.b16 %v374
    %v474 = vunpack.c.l.b16 %v375
    %v475 = vunpack.c.h.b16 %v375
    %v476 = vunpack.c.l.b16 %v376
    %v477 = vunpack.c.h.b16 %v376
    %v478 = vpack.c.b16 %v416, %v414
    %v479 = vpack.c.b16 %v417, %v415
    %v480 = vpack.c.b16 %v420, %v418
    %v481 = vpack.c.b16 %v421, %v419
    %v482 = vpack.c.b16 %v424, %v422
    %v483 = vpack.c.b16 %v425, %v423
    %v484 = vpack.c.b16 %v428, %v426
    %v485 = vpack.c.b16 %v429, %v427
    %v486 = vpack.c.b16 %v432, %v430
    %v487 = vpack.c.b16 %v433, %v431
    %v488 = vpack.c.b16 %v436, %v434
    %v489 = vpack.c.b16 %v437, %v435
    %v490 = vpack.c.b16 %v440, %v438
    %v491 = vpack.c.b16 %v441, %v439
    %v492 = vpack.c.b16 %v444, %v442
    %v493 = vpack.c.b16 %v445, %v443
    %v494 = vpack.c.b16 %v448, %v446
    %v495 = vpack.c.b16 %v449, %v447
    %v496 = vpack.c.b16 %v452, %v450
    %v497 = vpack.c.b16 %v453, %v451
    %v498 = vpack.c.b16 %v456, %v454
    %v499 = vpack.c.b16 %v457, %v455
    %v500 = vpack.c.b16 %v460, %v458
    %v501 = vpack.c.b16 %v461, %v459
    %v502 = vpack.c.b16 %v464, %v462
    %v503 = vpack.c.b16 %v465, %v463
    %v504 = vpack.c.b16 %v468, %v466
    %v505 = vpack.c.b16 %v469, %v467
    %v506 = vpack.c.b16 %v472, %v470
    %v507 = vpack.c.b16 %v473, %v471
    %v508 = vpack.c.b16 %v476, %v474
    %v509 = vpack.c.b16 %v477, %v475
    %542 = vmatpush.bf16.msra.mxu0 %v492
    %543 = vmatpush.bf16.msra.mxu0 %v490
    %544 = vmatpush.bf16.msra.mxu0 %v488
    %545 = vmatpush.bf16.msra.mxu0 %v486
    %546 = vmatpush.bf16.msra.mxu0 %v484
    %547 = vmatpush.bf16.msra.mxu0 %v482
    %548 = vmatpush.bf16.msra.mxu0 %v480
    %549 = vmatpush.bf16.msra.mxu0 %v478
    %550 = vmatmul.bf16.gmra.mxu0 %v343
    %v551 = vpop.f32.mrf.mxu0
    %v552 = vadd.f32 %v380, %v551
    %v553 = vpop.f32.mrf.mxu0
    %554 = vdwg.mxu0
    %555 = vmatpush.bf16.msra.mxu0 %v508
    %556 = vmatpush.bf16.msra.mxu0 %v506
    %557 = vmatpush.bf16.msra.mxu0 %v504
    %558 = vmatpush.bf16.msra.mxu0 %v502
    %559 = vmatpush.bf16.msra.mxu0 %v500
    %560 = vmatpush.bf16.msra.mxu0 %v498
    %561 = vmatpush.bf16.msra.mxu0 %v496
    %562 = vmatpush.bf16.msra.mxu0 %v494
    %563 = vmatmul.bf16.gmra.mxu0 %v344
    %v564 = vpop.f32.mrf.mxu0
    %v565 = vadd.f32 %v552, %v564
    %v566 = vpop.f32.mrf.mxu0
    %567 = vdwg.mxu0
    %568 = vmatpush.bf16.msra.mxu0 %v493
    %569 = vmatpush.bf16.msra.mxu0 %v491
    %570 = vmatpush.bf16.msra.mxu0 %v489
    %571 = vmatpush.bf16.msra.mxu0 %v487
    %572 = vmatpush.bf16.msra.mxu0 %v485
    %573 = vmatpush.bf16.msra.mxu0 %v483
    %574 = vmatpush.bf16.msra.mxu0 %v481
    %575 = vmatpush.bf16.msra.mxu0 %v479
    %576 = vmatmul.bf16.gmra.mxu0 %v343
    %v577 = vpop.f32.mrf.mxu0
    %v578 = vadd.f32 %v380, %v577
    %v579 = vpop.f32.mrf.mxu0
    %580 = vdwg.mxu0
    %581 = vmatpush.bf16.msra.mxu0 %v509
    %582 = vmatpush.bf16.msra.mxu0 %v507
    %583 = vmatpush.bf16.msra.mxu0 %v505
    %584 = vmatpush.bf16.msra.mxu0 %v503
    %585 = vmatpush.bf16.msra.mxu0 %v501
    %586 = vmatpush.bf16.msra.mxu0 %v499
    %587 = vmatpush.bf16.msra.mxu0 %v497
    %588 = vmatpush.bf16.msra.mxu0 %v495
    %589 = vmatmul.bf16.gmra.mxu0 %v344
    %v590 = vpop.f32.mrf.mxu0
    %v591 = vadd.f32 %v578, %v590
    %v592 = vpop.f32.mrf.mxu0
    %593 = vdwg.mxu0
    %v594 = vadd.s32 %v317, 1
    %v595 = vadd.s32 %v318, 1
    %v596 = vcvt.s32.f32 %v594
    %v597 = vcvt.s32.f32 %v595
    %599 = vset.pattern.permute.xlu0 0
    %600 = vperm.xlu0 %599, %v311
    %v601 = vpop.permute.xlu0 %600
    %v603 = vsub.f32 %v601, %v565
    %v604 = vsub.f32 %v601, %v591
    %v605 = vadd.f32 %v601, %v596
    %v606 = vadd.f32 %v601, %v597
    %v607 = vsub.f32 %v605, %v565
    %v608 = vsub.f32 %v606, %v591
    %v609 = vsub.f32 %v607, 1.0
    %v610 = vsub.f32 %v608, 1.0
    %v611 = vadd.f32 %v609, %v332
    %v612 = vadd.f32 %v610, %v338
    %vm613 = vcmp.eq.s32.totalorder %v317, 0
    %vm614 = vcmp.eq.s32.totalorder %v318, 0
    %v615 = vmul.f32 %v332, %v596
    %v616 = vmul.f32 %v338, %v597
    %v617 = vadd.f32 %v603, %v615
    %v618 = vadd.f32 %v604, %v616
    %v619 = vsel %vm613, 1.0, %v617
    %v620 = vsel %vm614, 1.0, %v618
    %v621 = vmul.f32 %v611, %v607
    %v622 = vmul.f32 %v612, %v608
    %v623 = vsel %vm613, %v607, %v621
    %v624 = vsel %vm614, %v608, %v622
    %v625 = vrcp.pop %v623
    %v626 = vmul.f32 %v623, %v625
    %v627 = vsub.f32 1.0, %v626
    %v628 = vmul.f32 %v625, %v627
    %v629 = vadd.f32 %v625, %v628
    %vm630 = vweird.f32 %v623
    %vm631 = vweird.f32 %v625
    %vm632 = vmor %vm630, %vm631
    %v633 = vsel %vm632, %v625, %v629
    %v634 = vand.u32 2147483647, %v623
    %vm635 = vcmp.eq.f32.partialorder %v634, 8.507059e+37
    %v636 = vand.u32 %v623, 2147483648
    %v637 = vor.u32 1.1754944e-38, %v636
    %v638 = vsel %vm635, %v637, %v633
    %v639 = vrcp.pop %v624
    %v640 = vmul.f32 %v624, %v639
    %v641 = vsub.f32 1.0, %v640
    %v642 = vmul.f32 %v639, %v641
    %v643 = vadd.f32 %v639, %v642
    %vm644 = vweird.f32 %v624
    %vm645 = vweird.f32 %v639
    %vm646 = vmor %vm644, %vm645
    %v647 = vsel %vm646, %v639, %v643
    %v648 = vand.u32 2147483647, %v624
    %vm649 = vcmp.eq.f32.partialorder %v648, 8.507059e+37
    %v650 = vand.u32 %v624, 2147483648
    %v651 = vor.u32 1.1754944e-38, %v650
    %v652 = vsel %vm649, %v651, %v647
    %v653 = vmul.f32 %v619, %v638
    %v654 = vmul.f32 %v620, %v652
    %v655 = vmul.f32 %v339, %v653
    %v656 = vmul.f32 %v340, %v654
    %vm657 = vcmask 1043456
    %v658 = vsel %vm657, %v655, 0.0
    %v659 = vsel %vm657, %v656, 0.0
    %v660 = vadd.f32 %v658, %v659
    %661 = vadd.xlane.f32.xlu0 %v660
    %v662 = vpop.xlane.xlu0 %661
    %v663 = vadd.f32 %v662, 0.0
    %v664 = vld [vmem:[%s0 + $0x8] sm:$0xff]
    %666 = vst [vmem:[#allocation1] ss:$2 sm:$0xff] %v664
    %v667 = vld.sshfl [vmem:[#allocation1] sm:$0xff pattern:$0x75316420]
    %v668 = vld.sshfl [vmem:[#allocation1 + $0x8] sm:$0xff pattern:$0x75316420]
    %v669 = vand.u32 %v667, 1
    %v670 = vand.u32 %v668, 1
    %v671 = vshrl.u32 %v669, 16
    %v672 = vand.u32 %v669, 65535
    %v673 = vcvt.s32.f32 %v671
    %v674 = vmul.f32 %v673, 65536.0
    %v675 = vcvt.s32.f32 %v672
    %v676 = vadd.f32 %v674, %v675
    %v677 = vshrl.u32 %v670, 16
    %v678 = vand.u32 %v670, 65535
    %v679 = vcvt.s32.f32 %v677
    %v680 = vmul.f32 %v679, 65536.0
    %v681 = vcvt.s32.f32 %v678
    %v682 = vadd.f32 %v680, %v681
    %v683 = vand.u32 %v667, 2147483646
    %v684 = vand.u32 %v668, 2147483646
    %v687 = vpack.c.bf16 %v676, %v676
    %v688 = vpack.c.bf16 %v682, %v682
    %690 = vset.pattern.permute.xlu0 127
    %691 = vperm.xlu0 %690, %v591
    %v692 = vpop.permute.xlu0 %691
    %694 = vmatpush.bf16.msra.mxu0 %v492
    %695 = vmatpush.bf16.msra.mxu0 %v490
    %696 = vmatpush.bf16.msra.mxu0 %v488
    %697 = vmatpush.bf16.msra.mxu0 %v486
    %698 = vmatpush.bf16.msra.mxu0 %v484
    %699 = vmatpush.bf16.msra.mxu0 %v482
    %700 = vmatpush.bf16.msra.mxu0 %v480
    %701 = vmatpush.bf16.msra.mxu0 %v478
    %702 = vmatmul.bf16.gmra.mxu0 %v687
    %v703 = vpop.f32.mrf.mxu0
    %v704 = vadd.f32 %v692, %v703
    %v705 = vpop.f32.mrf.mxu0
    %706 = vdwg.mxu0
    %707 = vmatpush.bf16.msra.mxu0 %v508
    %708 = vmatpush.bf16.msra.mxu0 %v506
    %709 = vmatpush.bf16.msra.mxu0 %v504
    %710 = vmatpush.bf16.msra.mxu0 %v502
    %711 = vmatpush.bf16.msra.mxu0 %v500
    %712 = vmatpush.bf16.msra.mxu0 %v498
    %713 = vmatpush.bf16.msra.mxu0 %v496
    %714 = vmatpush.bf16.msra.mxu0 %v494
    %715 = vmatmul.bf16.gmra.mxu0 %v688
    %v716 = vpop.f32.mrf.mxu0
    %v717 = vadd.f32 %v704, %v716
    %v718 = vpop.f32.mrf.mxu0
    %719 = vdwg.mxu0
    %720 = vmatpush.bf16.msra.mxu0 %v493
    %721 = vmatpush.bf16.msra.mxu0 %v491
    %722 = vmatpush.bf16.msra.mxu0 %v489
    %723 = vmatpush.bf16.msra.mxu0 %v487
    %724 = vmatpush.bf16.msra.mxu0 %v485
    %725 = vmatpush.bf16.msra.mxu0 %v483
    %726 = vmatpush.bf16.msra.mxu0 %v481
    %727 = vmatpush.bf16.msra.mxu0 %v479
    %728 = vmatmul.bf16.gmra.mxu0 %v687
    %v729 = vpop.f32.mrf.mxu0
    %v730 = vadd.f32 %v692, %v729
    %v731 = vpop.f32.mrf.mxu0
    %732 = vdwg.mxu0
    %733 = vmatpush.bf16.msra.mxu0 %v509
    %734 = vmatpush.bf16.msra.mxu0 %v507
    %735 = vmatpush.bf16.msra.mxu0 %v505
    %736 = vmatpush.bf16.msra.mxu0 %v503
    %737 = vmatpush.bf16.msra.mxu0 %v501
    %738 = vmatpush.bf16.msra.mxu0 %v499
    %739 = vmatpush.bf16.msra.mxu0 %v497
    %740 = vmatpush.bf16.msra.mxu0 %v495
    %741 = vmatmul.bf16.gmra.mxu0 %v688
    %v742 = vpop.f32.mrf.mxu0
    %v743 = vadd.f32 %v730, %v742
    %v744 = vpop.f32.mrf.mxu0
    %745 = vdwg.mxu0
    %v746 = vadd.s32 %v317, 256
    %v747 = vadd.s32 %v318, 256
    %v748 = vadd.s32 %v746, 1
    %v749 = vadd.s32 %v747, 1
    %v750 = vcvt.s32.f32 %v748
    %v751 = vcvt.s32.f32 %v749
    %v752 = vsub.f32 %v601, %v717
    %v753 = vsub.f32 %v601, %v743
    %v754 = vadd.f32 %v601, %v750
    %v755 = vadd.f32 %v601, %v751
    %v756 = vsub.f32 %v754, %v717
    %v757 = vsub.f32 %v755, %v743
    %v758 = vsub.f32 %v756, 1.0
    %v759 = vsub.f32 %v757, 1.0
    %v760 = vadd.f32 %v758, %v676
    %v761 = vadd.f32 %v759, %v682
    %vm762 = vcmp.eq.s32.totalorder %v746, 0
    %vm763 = vcmp.eq.s32.totalorder %v747, 0
    %v764 = vmul.f32 %v676, %v750
    %v765 = vmul.f32 %v682, %v751
    %v766 = vadd.f32 %v752, %v764
    %v767 = vadd.f32 %v753, %v765
    %v768 = vsel %vm762, 1.0, %v766
    %v769 = vsel %vm763, 1.0, %v767
    %v770 = vmul.f32 %v760, %v756
    %v771 = vmul.f32 %v761, %v757
    %v772 = vsel %vm762, %v756, %v770
    %v773 = vsel %vm763, %v757, %v771
    %v774 = vrcp.pop %v772
    %v775 = vmul.f32 %v772, %v774
    %v776 = vsub.f32 1.0, %v775
    %v777 = vmul.f32 %v774, %v776
    %v778 = vadd.f32 %v774, %v777
    %vm779 = vweird.f32 %v772
    %vm780 = vweird.f32 %v774
    %vm781 = vmor %vm779, %vm780
    %v782 = vsel %vm781, %v774, %v778
    %v783 = vand.u32 2147483647, %v772
    %vm784 = vcmp.eq.f32.partialorder %v783, 8.507059e+37
    %v785 = vand.u32 %v772, 2147483648
    %v786 = vor.u32 1.1754944e-38, %v785
    %v787 = vsel %vm784, %v786, %v782
    %v788 = vrcp.pop %v773
    %v789 = vmul.f32 %v773, %v788
    %v790 = vsub.f32 1.0, %v789
    %v791 = vmul.f32 %v788, %v790
    %v792 = vadd.f32 %v788, %v791
    %vm793 = vweird.f32 %v773
    %vm794 = vweird.f32 %v788
    %vm795 = vmor %vm793, %vm794
    %v796 = vsel %vm795, %v788, %v792
    %v797 = vand.u32 2147483647, %v773
    %vm798 = vcmp.eq.f32.partialorder %v797, 8.507059e+37
    %v799 = vand.u32 %v773, 2147483648
    %v800 = vor.u32 1.1754944e-38, %v799
    %v801 = vsel %vm798, %v800, %v796
    %v802 = vmul.f32 %v768, %v787
    %v803 = vmul.f32 %v769, %v801
    %v804 = vmul.f32 %v683, %v802
    %v805 = vmul.f32 %v684, %v803
    %v806 = vsel %vm657, %v804, 0.0
    %v807 = vsel %vm657, %v805, 0.0
    %v808 = vadd.f32 %v806, %v807
    %809 = vadd.xlane.f32.xlu0 %v808
    %v810 = vpop.xlane.xlu0 %809
    %v811 = vadd.f32 %v663, %v810
    %v812 = vld [vmem:[%s0 + $0x10] sm:$0xff]
    %814 = vst [vmem:[#allocation1] ss:$2 sm:$0xff] %v812
    %v815 = vld.sshfl [vmem:[#allocation1] sm:$0xff pattern:$0x75316420]
    %v816 = vld.sshfl [vmem:[#allocation1 + $0x8] sm:$0xff pattern:$0x75316420]
    %v817 = vand.u32 %v815, 1
    %v818 = vand.u32 %v816, 1
    %v819 = vshrl.u32 %v817, 16
    %v820 = vand.u32 %v817, 65535
    %v821 = vcvt.s32.f32 %v819
    %v822 = vmul.f32 %v821, 65536.0
    %v823 = vcvt.s32.f32 %v820
    %v824 = vadd.f32 %v822, %v823
    %v825 = vshrl.u32 %v818, 16
    %v826 = vand.u32 %v818, 65535
    %v827 = vcvt.s32.f32 %v825
    %v828 = vmul.f32 %v827, 65536.0
    %v829 = vcvt.s32.f32 %v826
    %v830 = vadd.f32 %v828, %v829
    %v831 = vand.u32 %v815, 2147483646
    %v832 = vand.u32 %v816, 2147483646
    %v835 = vpack.c.bf16 %v824, %v824
    %v836 = vpack.c.bf16 %v830, %v830
    %838 = vset.pattern.permute.xlu0 127
    %839 = vperm.xlu0 %838, %v743
    %v840 = vpop.permute.xlu0 %839
    %842 = vmatpush.bf16.msra.mxu0 %v492
    %843 = vmatpush.bf16.msra.mxu0 %v490
    %844 = vmatpush.bf16.msra.mxu0 %v488
    %845 = vmatpush.bf16.msra.mxu0 %v486
    %846 = vmatpush.bf16.msra.mxu0 %v484
    %847 = vmatpush.bf16.msra.mxu0 %v482
    %848 = vmatpush.bf16.msra.mxu0 %v480
    %849 = vmatpush.bf16.msra.mxu0 %v478
    %850 = vmatmul.bf16.gmra.mxu0 %v835
    %v851 = vpop.f32.mrf.mxu0
    %v852 = vadd.f32 %v840, %v851
    %v853 = vpop.f32.mrf.mxu0
    %854 = vdwg.mxu0
    %855 = vmatpush.bf16.msra.mxu0 %v508
    %856 = vmatpush.bf16.msra.mxu0 %v506
    %857 = vmatpush.bf16.msra.mxu0 %v504
    %858 = vmatpush.bf16.msra.mxu0 %v502
    %859 = vmatpush.bf16.msra.mxu0 %v500
    %860 = vmatpush.bf16.msra.mxu0 %v498
    %861 = vmatpush.bf16.msra.mxu0 %v496
    %862 = vmatpush.bf16.msra.mxu0 %v494
    %863 = vmatmul.bf16.gmra.mxu0 %v836
    %v864 = vpop.f32.mrf.mxu0
    %v865 = vadd.f32 %v852, %v864
    %v866 = vpop.f32.mrf.mxu0
    %867 = vdwg.mxu0
    %868 = vmatpush.bf16.msra.mxu0 %v493
    %869 = vmatpush.bf16.msra.mxu0 %v491
    %870 = vmatpush.bf16.msra.mxu0 %v489
    %871 = vmatpush.bf16.msra.mxu0 %v487
    %872 = vmatpush.bf16.msra.mxu0 %v485
    %873 = vmatpush.bf16.msra.mxu0 %v483
    %874 = vmatpush.bf16.msra.mxu0 %v481
    %875 = vmatpush.bf16.msra.mxu0 %v479
    %876 = vmatmul.bf16.gmra.mxu0 %v835
    %v877 = vpop.f32.mrf.mxu0
    %v878 = vadd.f32 %v840, %v877
    %v879 = vpop.f32.mrf.mxu0
    %880 = vdwg.mxu0
    %881 = vmatpush.bf16.msra.mxu0 %v509
    %882 = vmatpush.bf16.msra.mxu0 %v507
    %883 = vmatpush.bf16.msra.mxu0 %v505
    %884 = vmatpush.bf16.msra.mxu0 %v503
    %885 = vmatpush.bf16.msra.mxu0 %v501
    %886 = vmatpush.bf16.msra.mxu0 %v499
    %887 = vmatpush.bf16.msra.mxu0 %v497
    %888 = vmatpush.bf16.msra.mxu0 %v495
    %889 = vmatmul.bf16.gmra.mxu0 %v836
    %v890 = vpop.f32.mrf.mxu0
    %v891 = vadd.f32 %v878, %v890
    %v892 = vpop.f32.mrf.mxu0
    %893 = vdwg.mxu0
    %v894 = vadd.s32 %v317, 512
    %v895 = vadd.s32 %v318, 512
    %v896 = vadd.s32 %v894, 1
    %v897 = vadd.s32 %v895, 1
    %v898 = vcvt.s32.f32 %v896
    %v899 = vcvt.s32.f32 %v897
    %v900 = vsub.f32 %v601, %v865
    %v901 = vsub.f32 %v601, %v891
    %v902 = vadd.f32 %v601, %v898
    %v903 = vadd.f32 %v601, %v899
    %v904 = vsub.f32 %v902, %v865
    %v905 = vsub.f32 %v903, %v891
    %v906 = vsub.f32 %v904, 1.0
    %v907 = vsub.f32 %v905, 1.0
    %v908 = vadd.f32 %v906, %v824
    %v909 = vadd.f32 %v907, %v830
    %vm910 = vcmp.eq.s32.totalorder %v894, 0
    %vm911 = vcmp.eq.s32.totalorder %v895, 0
    %v912 = vmul.f32 %v824, %v898
    %v913 = vmul.f32 %v830, %v899
    %v914 = vadd.f32 %v900, %v912
    %v915 = vadd.f32 %v901, %v913
    %v916 = vsel %vm910, 1.0, %v914
    %v917 = vsel %vm911, 1.0, %v915
    %v918 = vmul.f32 %v908, %v904
    %v919 = vmul.f32 %v909, %v905
    %v920 = vsel %vm910, %v904, %v918
    %v921 = vsel %vm911, %v905, %v919
    %v922 = vrcp.pop %v920
    %v923 = vmul.f32 %v920, %v922
    %v924 = vsub.f32 1.0, %v923
    %v925 = vmul.f32 %v922, %v924
    %v926 = vadd.f32 %v922, %v925
    %vm927 = vweird.f32 %v920
    %vm928 = vweird.f32 %v922
    %vm929 = vmor %vm927, %vm928
    %v930 = vsel %vm929, %v922, %v926
    %v931 = vand.u32 2147483647, %v920
    %vm932 = vcmp.eq.f32.partialorder %v931, 8.507059e+37
    %v933 = vand.u32 %v920, 2147483648
    %v934 = vor.u32 1.1754944e-38, %v933
    %v935 = vsel %vm932, %v934, %v930
    %v936 = vrcp.pop %v921
    %v937 = vmul.f32 %v921, %v936
    %v938 = vsub.f32 1.0, %v937
    %v939 = vmul.f32 %v936, %v938
    %v940 = vadd.f32 %v936, %v939
    %vm941 = vweird.f32 %v921
    %vm942 = vweird.f32 %v936
    %vm943 = vmor %vm941, %vm942
    %v944 = vsel %vm943, %v936, %v940
    %v945 = vand.u32 2147483647, %v921
    %vm946 = vcmp.eq.f32.partialorder %v945, 8.507059e+37
    %v947 = vand.u32 %v921, 2147483648
    %v948 = vor.u32 1.1754944e-38, %v947
    %v949 = vsel %vm946, %v948, %v944
    %v950 = vmul.f32 %v916, %v935
    %v951 = vmul.f32 %v917, %v949
    %v952 = vmul.f32 %v831, %v950
    %v953 = vmul.f32 %v832, %v951
    %v954 = vsel %vm657, %v952, 0.0
    %v955 = vsel %vm657, %v953, 0.0
    %v956 = vadd.f32 %v954, %v955
    %957 = vadd.xlane.f32.xlu0 %v956
    %v958 = vpop.xlane.xlu0 %957
    %v959 = vadd.f32 %v811, %v958
    %v960 = vld [vmem:[%s0 + $0x18] sm:$0xff]
    %962 = vst [vmem:[#allocation1] ss:$2 sm:$0xff] %v960
    %v963 = vld.sshfl [vmem:[#allocation1] sm:$0xff pattern:$0x75316420]
    %v964 = vld.sshfl [vmem:[#allocation1 + $0x8] sm:$0xff pattern:$0x75316420]
    %v965 = vand.u32 %v963, 1
    %v966 = vand.u32 %v964, 1
    %v967 = vshrl.u32 %v965, 16
    %v968 = vand.u32 %v965, 65535
    %v969 = vcvt.s32.f32 %v967
    %v970 = vmul.f32 %v969, 65536.0
    %v971 = vcvt.s32.f32 %v968
    %v972 = vadd.f32 %v970, %v971
    %v973 = vshrl.u32 %v966, 16
    %v974 = vand.u32 %v966, 65535
    %v975 = vcvt.s32.f32 %v973
    %v976 = vmul.f32 %v975, 65536.0
    %v977 = vcvt.s32.f32 %v974
    %v978 = vadd.f32 %v976, %v977
    %v979 = vand.u32 %v963, 2147483646
    %v980 = vand.u32 %v964, 2147483646
    %v983 = vpack.c.bf16 %v972, %v972
    %v984 = vpack.c.bf16 %v978, %v978
    %986 = vset.pattern.permute.xlu0 127
    %987 = vperm.xlu0 %986, %v891
    %v988 = vpop.permute.xlu0 %987
    %990 = vmatpush.bf16.msra.mxu0 %v492
    %991 = vmatpush.bf16.msra.mxu0 %v490
    %992 = vmatpush.bf16.msra.mxu0 %v488
    %993 = vmatpush.bf16.msra.mxu0 %v486
    %994 = vmatpush.bf16.msra.mxu0 %v484
    %995 = vmatpush.bf16.msra.mxu0 %v482
    %996 = vmatpush.bf16.msra.mxu0 %v480
    %997 = vmatpush.bf16.msra.mxu0 %v478
    %998 = vmatmul.bf16.gmra.mxu0 %v983
    %v999 = vpop.f32.mrf.mxu0
    %v1000 = vadd.f32 %v988, %v999
    %v1001 = vpop.f32.mrf.mxu0
    %1002 = vdwg.mxu0
    %1003 = vmatpush.bf16.msra.mxu0 %v508
    %1004 = vmatpush.bf16.msra.mxu0 %v506
    %1005 = vmatpush.bf16.msra.mxu0 %v504
    %1006 = vmatpush.bf16.msra.mxu0 %v502
    %1007 = vmatpush.bf16.msra.mxu0 %v500
    %1008 = vmatpush.bf16.msra.mxu0 %v498
    %1009 = vmatpush.bf16.msra.mxu0 %v496
    %1010 = vmatpush.bf16.msra.mxu0 %v494
    %1011 = vmatmul.bf16.gmra.mxu0 %v984
    %v1012 = vpop.f32.mrf.mxu0
    %v1013 = vadd.f32 %v1000, %v1012
    %v1014 = vpop.f32.mrf.mxu0
    %1015 = vdwg.mxu0
    %1016 = vmatpush.bf16.msra.mxu0 %v493
    %1017 = vmatpush.bf16.msra.mxu0 %v491
    %1018 = vmatpush.bf16.msra.mxu0 %v489
    %1019 = vmatpush.bf16.msra.mxu0 %v487
    %1020 = vmatpush.bf16.msra.mxu0 %v485
    %1021 = vmatpush.bf16.msra.mxu0 %v483
    %1022 = vmatpush.bf16.msra.mxu0 %v481
    %1023 = vmatpush.bf16.msra.mxu0 %v479
    %1024 = vmatmul.bf16.gmra.mxu0 %v983
    %v1025 = vpop.f32.mrf.mxu0
    %v1026 = vadd.f32 %v988, %v1025
    %v1027 = vpop.f32.mrf.mxu0
    %1028 = vdwg.mxu0
    %1029 = vmatpush.bf16.msra.mxu0 %v509
    %1030 = vmatpush.bf16.msra.mxu0 %v507
    %1031 = vmatpush.bf16.msra.mxu0 %v505
    %1032 = vmatpush.bf16.msra.mxu0 %v503
    %1033 = vmatpush.bf16.msra.mxu0 %v501
    %1034 = vmatpush.bf16.msra.mxu0 %v499
    %1035 = vmatpush.bf16.msra.mxu0 %v497
    %1036 = vmatpush.bf16.msra.mxu0 %v495
    %1037 = vmatmul.bf16.gmra.mxu0 %v984
    %v1038 = vpop.f32.mrf.mxu0
    %v1039 = vadd.f32 %v1026, %v1038
    %v1040 = vpop.f32.mrf.mxu0
    %1041 = vdwg.mxu0
    %v1042 = vadd.s32 %v317, 768
    %v1043 = vadd.s32 %v318, 768
    %v1044 = vadd.s32 %v1042, 1
    %v1045 = vadd.s32 %v1043, 1
    %v1046 = vcvt.s32.f32 %v1044
    %v1047 = vcvt.s32.f32 %v1045
    %v1048 = vsub.f32 %v601, %v1013
    %v1049 = vsub.f32 %v601, %v1039
    %v1050 = vadd.f32 %v601, %v1046
    %v1051 = vadd.f32 %v601, %v1047
    %v1052 = vsub.f32 %v1050, %v1013
    %v1053 = vsub.f32 %v1051, %v1039
    %v1054 = vsub.f32 %v1052, 1.0
    %v1055 = vsub.f32 %v1053, 1.0
    %v1056 = vadd.f32 %v1054, %v972
    %v1057 = vadd.f32 %v1055, %v978
    %vm1058 = vcmp.eq.s32.totalorder %v1042, 0
    %vm1059 = vcmp.eq.s32.totalorder %v1043, 0
    %v1060 = vmul.f32 %v972, %v1046
    %v1061 = vmul.f32 %v978, %v1047
    %v1062 = vadd.f32 %v1048, %v1060
    %v1063 = vadd.f32 %v1049, %v1061
    %v1064 = vsel %vm1058, 1.0, %v1062
    %v1065 = vsel %vm1059, 1.0, %v1063
    %v1066 = vmul.f32 %v1056, %v1052
    %v1067 = vmul.f32 %v1057, %v1053
    %v1068 = vsel %vm1058, %v1052, %v1066
    %v1069 = vsel %vm1059, %v1053, %v1067
    %v1070 = vrcp.pop %v1068
    %v1071 = vmul.f32 %v1068, %v1070
    %v1072 = vsub.f32 1.0, %v1071
    %v1073 = vmul.f32 %v1070, %v1072
    %v1074 = vadd.f32 %v1070, %v1073
    %vm1075 = vweird.f32 %v1068
    %vm1076 = vweird.f32 %v1070
    %vm1077 = vmor %vm1075, %vm1076
    %v1078 = vsel %vm1077, %v1070, %v1074
    %v1079 = vand.u32 2147483647, %v1068
    %vm1080 = vcmp.eq.f32.partialorder %v1079, 8.507059e+37
    %v1081 = vand.u32 %v1068, 2147483648
    %v1082 = vor.u32 1.1754944e-38, %v1081
    %v1083 = vsel %vm1080, %v1082, %v1078
    %v1084 = vrcp.pop %v1069
    %v1085 = vmul.f32 %v1069, %v1084
    %v1086 = vsub.f32 1.0, %v1085
    %v1087 = vmul.f32 %v1084, %v1086
    %v1088 = vadd.f32 %v1084, %v1087
    %vm1089 = vweird.f32 %v1069
    %vm1090 = vweird.f32 %v1084
    %vm1091 = vmor %vm1089, %vm1090
    %v1092 = vsel %vm1091, %v1084, %v1088
    %v1093 = vand.u32 2147483647, %v1069
    %vm1094 = vcmp.eq.f32.partialorder %v1093, 8.507059e+37
    %v1095 = vand.u32 %v1069, 2147483648
    %v1096 = vor.u32 1.1754944e-38, %v1095
    %v1097 = vsel %vm1094, %v1096, %v1092
    %v1098 = vmul.f32 %v1064, %v1083
    %v1099 = vmul.f32 %v1065, %v1097
    %v1100 = vmul.f32 %v979, %v1098
    %v1101 = vmul.f32 %v980, %v1099
    %v1102 = vsel %vm657, %v1100, 0.0
    %v1103 = vsel %vm657, %v1101, 0.0
    %v1104 = vadd.f32 %v1102, %v1103
    %1105 = vadd.xlane.f32.xlu0 %v1104
    %v1106 = vpop.xlane.xlu0 %1105
    %v1107 = vadd.f32 %v959, %v1106
    %1109 = vrot.lane.b32.xlu0 %v1039, 1
    %v1110 = vpop.permute.xlu0 %1109
    %vm1112 = vcmask 3072
    %1113 = vst.msk [vmem:[#allocation2] sm:$0xf] %vm1112, %v1110
    %v1114 = vld [vmem:[#allocation3] sm:$0xf]
    %v1115 = vadd.f32 %v1114, %v1107
    %1116 = vst.msk [vmem:[#allocation3] sm:$0xf] %vm1112, %v1115
    // Predicated region
    $region14: #{ce_iou_loss.3} parent=1 // pred_check
      %p1117 = pneg %p12
    $region15: #{ce_iou_loss.3} parent=1 // pred_check_branch
      %1119 = sbr.rel (%p1117) target = $region17
    $region16: #{ce_iou_loss.3} parent=1 // pred_region
      %v1120 = vld [vmem:[#allocation3] sm:$0xf]
      %v1121 = vsel %vm1112, %v1120, 0.0
      %1122 = vadd.xlane.f32.xlu0 %v1121
      %v1123 = vpop.xlane.xlu0 %1122
      %v1124 = vrot.slane %v1123, 4
      %v1125 = vadd.f32 %v1123, %v1124
      %v1126 = vrot.slane %v1125, 2
      %v1127 = vadd.f32 %v1125, %v1126
      %v1128 = vrot.slane %v1127, 1
      %v1129 = vadd.f32 %v1127, %v1128
      %s1130 = vtos %v1129
      %v1131 = vrcp.pop 4.0
      %v1132 = vmul.f32 4.0, %v1131
      %v1133 = vsub.f32 1.0, %v1132
      %v1134 = vmul.f32 %v1131, %v1133
      %v1135 = vadd.f32 %v1131, %v1134
      %vm1136 = vweird.f32 %v1131
      %v1137 = vsel %vm1136, %v1131, %v1135
      %s1138 = vtos %v1137
      %s1139 = smul.f32 %s1130, %s1138
      %v1140 = vstv %s1139
      %vm1141 = vcmask 0
      %1142 = vst.msk [vmem:[#allocation5] sm:$0x1] %vm1141, %v1140
    $region17: #{ce_iou_loss.3} parent=1 // pred_fallthru
      _
    // Predicated region
    $region18: #{ce_iou_loss.3} parent=1 // pred_check
      _
    $region19: #{ce_iou_loss.3} parent=1 // pred_check_branch
      %1144 = sbr.rel (0) target = $region21
    $region20: #{ce_iou_loss.3} parent=1 // pred_region
      %1146 = vsyncadd [#allocation6], 0
      %s1148 = sshll.u32 [#allocation5], 4
      %s1149 = int_to_ptr.vmem [resolvable:$true] %s1148
      %s1150 = sshll.u32 %s2, 4
      %s1151 = int_to_ptr.hbm [resolvable:$true] %s1150
      %1153 = dma.vmem_to_hbm [thread:$0]  %s1149, 16, %s1151, [#allocation6]
    $region21: #{ce_iou_loss.3} parent=1 // pred_fallthru
      _
    // Predicated region
    $region22: #{ce_iou_loss.3} parent=1 // pred_check
      _
    $region23: #{ce_iou_loss.3} parent=1 // pred_check_branch
      %1155 = sbr.rel (0) target = $region25
    $region24: #{ce_iou_loss.3} parent=1 // pred_region
      %1157 = dma.done [#allocation6], 16
    $region25: #{ce_iou_loss.3} parent=1 // pred_fallthru
      _
    %1158 = vsyncpa [#allocation6], 1

</llo_original>
